<compile_context>
chip_gen: v7x
topology: tpu7x:2x2x1
jax: 0.10.0
libtpu: 0.0.40
codegen_flags: <defaults>
</compile_context>

<pallas_src>
import jax
import jax.numpy as jnp
from jax.experimental import pallas as pl
from jax.experimental.pallas import tpu as pltpu


def vae_kernel(x_ref, mask_ref, eps_ref,
               w1_ref, b1_ref,
               w2mu_ref, b2mu_ref, w2lv_ref, b2lv_ref,
               w3_ref, b3_ref, w4_ref, b4_ref,
               recon_ref, mu_ref, logvar_ref):
    f32 = jnp.float32
    bf16 = jnp.bfloat16

    # --- noise dropout (mask already scaled by 1/(1-p)) ---
    xd = x_ref[...] * mask_ref[...]                      # f32 on VPU

    # --- encoder: Linear -> ReLU ---
    h1 = jnp.dot(xd.astype(bf16), w1_ref[...],
                 preferred_element_type=f32) + b1_ref[...]
    h1 = jnp.maximum(h1, 0.0)
    h1b = h1.astype(bf16)

    # --- encoder head: two lane-aligned matmuls instead of chunk(2, dim=1) ---
    mu = jnp.dot(h1b, w2mu_ref[...], preferred_element_type=f32) + b2mu_ref[...]
    logvar = jnp.dot(h1b, w2lv_ref[...], preferred_element_type=f32) + b2lv_ref[...]

    # --- reparameterise: z = mu + eps * exp(logvar / 2)   (f32 EUP exp) ---
    z = mu + eps_ref[...] * jnp.exp(logvar * 0.5)

    # --- decoder: Linear -> ReLU -> Linear -> ReLU ---
    d1 = jnp.dot(z.astype(bf16), w3_ref[...],
                 preferred_element_type=f32) + b3_ref[...]
    d1 = jnp.maximum(d1, 0.0)
    recon = jnp.dot(d1.astype(bf16), w4_ref[...],
                    preferred_element_type=f32) + b4_ref[...]
    recon = jnp.maximum(recon, 0.0)

    recon_ref[...] = recon.astype(recon_ref.dtype)
    mu_ref[...] = mu.astype(mu_ref.dtype)
    logvar_ref[...] = logvar.astype(logvar_ref.dtype)


def _round_up(n, m):
    return ((n + m - 1) // m) * m


def vae_forward(x, mask, eps, params, *, block_b=128):
    """x, mask: [B, input_dim]; eps: [B, latent_dim].

    params = (w1, b1, w2, b2, w3, b3, w4, b4) with weights pre-transposed to
    [in, out] and biases [1, out] (PyTorch nn.Linear: y = x @ W^T + b).
    """
    w1, b1, w2, b2, w3, b3, w4, b4 = params
    B, input_dim = x.shape
    latent_dim = eps.shape[1]
    inter_dim = w1.shape[1]

    # lane-dense (multiple-of-128) feature axes
    ID = _round_up(input_dim, 128)
    HD = _round_up(inter_dim, 128)
    LD = _round_up(latent_dim, 128)

    # batch tile: multiple of 8 (f32 sublanes), up to block_b rows
    TB = min(block_b, _round_up(B, 8))
    Bp = _round_up(B, TB)
    grid = (Bp // TB,)

    def pad2(a, rows, cols):
        return jnp.pad(a, ((0, rows - a.shape[0]), (0, cols - a.shape[1])))

    # zero padding is exact: padded lanes stay 0 through dropout/matmuls/ReLU/exp
    xp = pad2(x, Bp, ID)
    maskp = pad2(mask, Bp, ID)
    epsp = pad2(eps, Bp, LD)

    bf16 = jnp.bfloat16
    w1p = pad2(w1, ID, HD).astype(bf16)
    b1p = pad2(b1, 1, HD)
    # split encoder head so mu / logvar both start at lane 0
    w2mu = pad2(w2[:, :latent_dim], HD, LD).astype(bf16)
    w2lv = pad2(w2[:, latent_dim:], HD, LD).astype(bf16)
    b2mu = pad2(b2[:, :latent_dim], 1, LD)
    b2lv = pad2(b2[:, latent_dim:], 1, LD)
    w3p = pad2(w3, LD, HD).astype(bf16)
    b3p = pad2(b3, 1, HD)
    w4p = pad2(w4, HD, ID).astype(bf16)
    b4p = pad2(b4, 1, ID)

    def batch_spec(cols):
        return pl.BlockSpec((TB, cols), lambda i: (i, 0))

    def resident(a):
        return pl.BlockSpec(a.shape, lambda i: (0, 0))

    inputs = (xp, maskp, epsp,
              w1p, b1p, w2mu, b2mu, w2lv, b2lv,
              w3p, b3p, w4p, b4p)
    in_specs = ([batch_spec(ID), batch_spec(ID), batch_spec(LD)]
                + [resident(a) for a in inputs[3:]])

    out_shape = (
        jax.ShapeDtypeStruct((Bp, ID), jnp.float32),   # recon_x (padded)
        jax.ShapeDtypeStruct((Bp, LD), jnp.float32),   # mu      (padded)
        jax.ShapeDtypeStruct((Bp, LD), jnp.float32),   # logvar  (padded)
    )
    out_specs = [batch_spec(ID), batch_spec(LD), batch_spec(LD)]

    flops = 2 * Bp * (ID * HD + 2 * HD * LD + LD * HD + HD * ID)
    bytes_in = sum(int(a.size) * a.dtype.itemsize for a in inputs)
    bytes_out = 4 * (Bp * ID + 2 * Bp * LD)
    cost = pl.CostEstimate(flops=flops,
                           transcendentals=Bp * LD,
                           bytes_accessed=bytes_in + bytes_out)

    recon_p, mu_p, logvar_p = pl.pallas_call(
        vae_kernel,
        out_shape=out_shape,
        grid=grid,
        in_specs=in_specs,
        out_specs=out_specs,
        compiler_params=pltpu.CompilerParams(
            dimension_semantics=("parallel",)),
        cost_estimate=cost,
    )(*inputs)

    return (recon_p[:B, :input_dim],
            mu_p[:B, :latent_dim],
            logvar_p[:B, :latent_dim])


def init_linear(key, fan_in, fan_out):
    """PyTorch-style Linear init, weight pre-transposed to [in, out]."""
    kw, kb = jax.random.split(key)
    bound = 1.0 / jnp.sqrt(fan_in)
    w = jax.random.uniform(kw, (fan_in, fan_out), jnp.float32, -bound, bound)
    b = jax.random.uniform(kb, (1, fan_out), jnp.float32, -bound, bound)
    return w, b


def ref_forward(x, mask, eps, params, latent_dim):
    """Plain-JAX reference with the same bf16-operand / f32-accumulate matmuls."""
    w1, b1, w2, b2, w3, b3, w4, b4 = params
    bf = lambda a: a.astype(jnp.bfloat16)
    mm = lambda a, b: jnp.dot(bf(a), bf(b), preferred_element_type=jnp.float32)
    xd = x * mask
    h1 = jnp.maximum(mm(xd, w1) + b1, 0.0)
    h = mm(h1, w2) + b2
    mu, logvar = h[:, :latent_dim], h[:, latent_dim:]
    z = mu + eps * jnp.exp(logvar * 0.5)
    d1 = jnp.maximum(mm(z, w3) + b3, 0.0)
    recon = jnp.maximum(mm(d1, w4) + b4, 0.0)
    return recon, mu, logvar


if __name__ == "__main__":
    # small shapes consistent with the module
    batch = 256
    input_dim = 32
    inter_dim = 64
    latent_dim = 16
    noise_rate = 0.1

    root = jax.random.PRNGKey(0)
    kx, kmask, keps, k1, k2, k3, k4 = jax.random.split(root, 7)

    x = jax.random.normal(kx, (batch, input_dim), jnp.float32)

    # nn.Dropout(noise_rate) in training mode: keep w.p. (1-p), scale by 1/(1-p)
    keep = jax.random.bernoulli(kmask, 1.0 - noise_rate, (batch, input_dim))
    mask = keep.astype(jnp.float32) / (1.0 - noise_rate)

    # epsilon ~ N(0, I) for reparameterisation
    eps = jax.random.normal(keps, (batch, latent_dim), jnp.float32)

    # encoder: Linear(input_dim, inter_dim), Linear(inter_dim, 2*latent_dim)
    w1, b1 = init_linear(k1, input_dim, inter_dim)
    w2, b2 = init_linear(k2, inter_dim, 2 * latent_dim)
    # decoder: Linear(latent_dim, inter_dim), Linear(inter_dim, input_dim)
    w3, b3 = init_linear(k3, latent_dim, inter_dim)
    w4, b4 = init_linear(k4, inter_dim, input_dim)

    params = (w1, b1, w2, b2, w3, b3, w4, b4)

    recon_x, mu, logvar = vae_forward(x, mask, eps, params)
    jax.block_until_ready((recon_x, mu, logvar))

    # sanity reference (same bf16 matmul operands, f32 accumulation)
    recon_r, mu_r, logvar_r = ref_forward(x, mask, eps, params, latent_dim)

    assert recon_x.shape == (batch, input_dim)
    assert mu.shape == (batch, latent_dim) and logvar.shape == (batch, latent_dim)
    assert jnp.allclose(recon_x, recon_r, atol=2e-2, rtol=2e-2)
    assert jnp.allclose(mu, mu_r, atol=2e-2, rtol=2e-2)
    assert jnp.allclose(logvar, logvar_r, atol=2e-2, rtol=2e-2)

    print("KERNEL_OK")
</pallas_src>

<mosaic_0001>
module attributes {stable_mosaic.version = 11 : i64} {
  func.func @vae_kernel(%arg0: i32, %arg1: memref<128x128xf32, #tpu.memory_space<vmem>>, %arg2: memref<128x128xf32, #tpu.memory_space<vmem>>, %arg3: memref<128x128xf32, #tpu.memory_space<vmem>>, %arg4: memref<128x128xbf16, #tpu.memory_space<vmem>>, %arg5: memref<1x128xf32, #tpu.memory_space<vmem>>, %arg6: memref<128x128xbf16, #tpu.memory_space<vmem>>, %arg7: memref<1x128xf32, #tpu.memory_space<vmem>>, %arg8: memref<128x128xbf16, #tpu.memory_space<vmem>>, %arg9: memref<1x128xf32, #tpu.memory_space<vmem>>, %arg10: memref<128x128xbf16, #tpu.memory_space<vmem>>, %arg11: memref<1x128xf32, #tpu.memory_space<vmem>>, %arg12: memref<128x128xbf16, #tpu.memory_space<vmem>>, %arg13: memref<1x128xf32, #tpu.memory_space<vmem>>, %arg14: memref<128x128xf32, #tpu.memory_space<vmem>>, %arg15: memref<128x128xf32, #tpu.memory_space<vmem>>, %arg16: memref<128x128xf32, #tpu.memory_space<vmem>>) attributes {dimension_semantics = [#tpu.dimension_semantics<parallel>], iteration_bounds = array<i64: 2>, scalar_prefetch = 0 : i64, scratch_operands = 0 : i64, tpu.core_type = #tpu.core_type<tc>, window_params = [{transform_indices = @transform_0, window_bounds = array<i64: 128, 128>}, {transform_indices = @transform_1, window_bounds = array<i64: 128, 128>}, {transform_indices = @transform_2, window_bounds = array<i64: 128, 128>}, {pipeline_mode = #tpu.pipeline_mode<synchronous>, transform_indices = @transform_3, window_bounds = array<i64: 128, 128>}, {pipeline_mode = #tpu.pipeline_mode<synchronous>, transform_indices = @transform_4, window_bounds = array<i64: 1, 128>}, {pipeline_mode = #tpu.pipeline_mode<synchronous>, transform_indices = @transform_5, window_bounds = array<i64: 128, 128>}, {pipeline_mode = #tpu.pipeline_mode<synchronous>, transform_indices = @transform_6, window_bounds = array<i64: 1, 128>}, {pipeline_mode = #tpu.pipeline_mode<synchronous>, transform_indices = @transform_7, window_bounds = array<i64: 128, 128>}, {pipeline_mode = #tpu.pipeline_mode<synchronous>, transform_indices = @transform_8, window_bounds = array<i64: 1, 128>}, {pipeline_mode = #tpu.pipeline_mode<synchronous>, transform_indices = @transform_9, window_bounds = array<i64: 128, 128>}, {pipeline_mode = #tpu.pipeline_mode<synchronous>, transform_indices = @transform_10, window_bounds = array<i64: 1, 128>}, {pipeline_mode = #tpu.pipeline_mode<synchronous>, transform_indices = @transform_11, window_bounds = array<i64: 128, 128>}, {pipeline_mode = #tpu.pipeline_mode<synchronous>, transform_indices = @transform_12, window_bounds = array<i64: 1, 128>}, {transform_indices = @transform_13, window_bounds = array<i64: 128, 128>}, {transform_indices = @transform_14, window_bounds = array<i64: 128, 128>}, {transform_indices = @transform_15, window_bounds = array<i64: 128, 128>}]} {
    %c0 = arith.constant 0 : index
    %c0_0 = arith.constant 0 : index
    %0 = vector.load %arg1[%c0, %c0_0] : memref<128x128xf32, #tpu.memory_space<vmem>>, vector<128x128xf32>
    %c0_1 = arith.constant 0 : index
    %c0_2 = arith.constant 0 : index
    %1 = vector.load %arg2[%c0_1, %c0_2] : memref<128x128xf32, #tpu.memory_space<vmem>>, vector<128x128xf32>
    %2 = arith.mulf %0, %1 : vector<128x128xf32>
    %3 = arith.truncf %2 : vector<128x128xf32> to vector<128x128xbf16>
    %c0_3 = arith.constant 0 : index
    %c0_4 = arith.constant 0 : index
    %4 = vector.load %arg4[%c0_3, %c0_4] : memref<128x128xbf16, #tpu.memory_space<vmem>>, vector<128x128xbf16>
    %cst = arith.constant dense<0.000000e+00> : vector<128x128xf32>
    %5 = tpu.matmul %3, %4, %cst {dimension_numbers = #tpu.dot_dimension_numbers<[1], [0], [0], [1], [0, 0, 1, 1], [], []>} : vector<128x128xbf16>, vector<128x128xbf16>, vector<128x128xf32> -> vector<128x128xf32>
    %c0_5 = arith.constant 0 : index
    %c0_6 = arith.constant 0 : index
    %6 = vector.load %arg5[%c0_5, %c0_6] : memref<1x128xf32, #tpu.memory_space<vmem>>, vector<1x128xf32>
    %7 = vector.broadcast %6 : vector<1x128xf32> to vector<128x128xf32>
    %8 = arith.addf %5, %7 : vector<128x128xf32>
    %cst_7 = arith.constant 0.000000e+00 : f32
    %9 = vector.broadcast %cst_7 : f32 to vector<128x128xf32>
    %10 = arith.maximumf %8, %9 : vector<128x128xf32>
    %11 = arith.truncf %10 : vector<128x128xf32> to vector<128x128xbf16>
    %c0_8 = arith.constant 0 : index
    %c0_9 = arith.constant 0 : index
    %12 = vector.load %arg6[%c0_8, %c0_9] : memref<128x128xbf16, #tpu.memory_space<vmem>>, vector<128x128xbf16>
    %cst_10 = arith.constant dense<0.000000e+00> : vector<128x128xf32>
    %13 = tpu.matmul %11, %12, %cst_10 {dimension_numbers = #tpu.dot_dimension_numbers<[1], [0], [0], [1], [0, 0, 1, 1], [], []>} : vector<128x128xbf16>, vector<128x128xbf16>, vector<128x128xf32> -> vector<128x128xf32>
    %c0_11 = arith.constant 0 : index
    %c0_12 = arith.constant 0 : index
    %14 = vector.load %arg7[%c0_11, %c0_12] : memref<1x128xf32, #tpu.memory_space<vmem>>, vector<1x128xf32>
    %15 = vector.broadcast %14 : vector<1x128xf32> to vector<128x128xf32>
    %16 = arith.addf %13, %15 : vector<128x128xf32>
    %c0_13 = arith.constant 0 : index
    %c0_14 = arith.constant 0 : index
    %17 = vector.load %arg8[%c0_13, %c0_14] : memref<128x128xbf16, #tpu.memory_space<vmem>>, vector<128x128xbf16>
    %cst_15 = arith.constant dense<0.000000e+00> : vector<128x128xf32>
    %18 = tpu.matmul %11, %17, %cst_15 {dimension_numbers = #tpu.dot_dimension_numbers<[1], [0], [0], [1], [0, 0, 1, 1], [], []>} : vector<128x128xbf16>, vector<128x128xbf16>, vector<128x128xf32> -> vector<128x128xf32>
    %c0_16 = arith.constant 0 : index
    %c0_17 = arith.constant 0 : index
    %19 = vector.load %arg9[%c0_16, %c0_17] : memref<1x128xf32, #tpu.memory_space<vmem>>, vector<1x128xf32>
    %20 = vector.broadcast %19 : vector<1x128xf32> to vector<128x128xf32>
    %21 = arith.addf %18, %20 : vector<128x128xf32>
    %c0_18 = arith.constant 0 : index
    %c0_19 = arith.constant 0 : index
    %22 = vector.load %arg3[%c0_18, %c0_19] : memref<128x128xf32, #tpu.memory_space<vmem>>, vector<128x128xf32>
    %cst_20 = arith.constant 5.000000e-01 : f32
    %23 = vector.broadcast %cst_20 : f32 to vector<128x128xf32>
    %24 = arith.mulf %21, %23 : vector<128x128xf32>
    %25 = math.exp %24 : vector<128x128xf32>
    %26 = arith.mulf %22, %25 : vector<128x128xf32>
    %27 = arith.addf %16, %26 : vector<128x128xf32>
    %28 = arith.truncf %27 : vector<128x128xf32> to vector<128x128xbf16>
    %c0_21 = arith.constant 0 : index
    %c0_22 = arith.constant 0 : index
    %29 = vector.load %arg10[%c0_21, %c0_22] : memref<128x128xbf16, #tpu.memory_space<vmem>>, vector<128x128xbf16>
    %cst_23 = arith.constant dense<0.000000e+00> : vector<128x128xf32>
    %30 = tpu.matmul %28, %29, %cst_23 {dimension_numbers = #tpu.dot_dimension_numbers<[1], [0], [0], [1], [0, 0, 1, 1], [], []>} : vector<128x128xbf16>, vector<128x128xbf16>, vector<128x128xf32> -> vector<128x128xf32>
    %c0_24 = arith.constant 0 : index
    %c0_25 = arith.constant 0 : index
    %31 = vector.load %arg11[%c0_24, %c0_25] : memref<1x128xf32, #tpu.memory_space<vmem>>, vector<1x128xf32>
    %32 = vector.broadcast %31 : vector<1x128xf32> to vector<128x128xf32>
    %33 = arith.addf %30, %32 : vector<128x128xf32>
    %cst_26 = arith.constant 0.000000e+00 : f32
    %34 = vector.broadcast %cst_26 : f32 to vector<128x128xf32>
    %35 = arith.maximumf %33, %34 : vector<128x128xf32>
    %36 = arith.truncf %35 : vector<128x128xf32> to vector<128x128xbf16>
    %c0_27 = arith.constant 0 : index
    %c0_28 = arith.constant 0 : index
    %37 = vector.load %arg12[%c0_27, %c0_28] : memref<128x128xbf16, #tpu.memory_space<vmem>>, vector<128x128xbf16>
    %cst_29 = arith.constant dense<0.000000e+00> : vector<128x128xf32>
    %38 = tpu.matmul %36, %37, %cst_29 {dimension_numbers = #tpu.dot_dimension_numbers<[1], [0], [0], [1], [0, 0, 1, 1], [], []>} : vector<128x128xbf16>, vector<128x128xbf16>, vector<128x128xf32> -> vector<128x128xf32>
    %c0_30 = arith.constant 0 : index
    %c0_31 = arith.constant 0 : index
    %39 = vector.load %arg13[%c0_30, %c0_31] : memref<1x128xf32, #tpu.memory_space<vmem>>, vector<1x128xf32>
    %40 = vector.broadcast %39 : vector<1x128xf32> to vector<128x128xf32>
    %41 = arith.addf %38, %40 : vector<128x128xf32>
    %cst_32 = arith.constant 0.000000e+00 : f32
    %42 = vector.broadcast %cst_32 : f32 to vector<128x128xf32>
    %43 = arith.maximumf %41, %42 : vector<128x128xf32>
    %c0_33 = arith.constant 0 : index
    %c0_34 = arith.constant 0 : index
    %44 = vector.load %arg14[%c0_33, %c0_34] : memref<128x128xf32, #tpu.memory_space<vmem>>, vector<128x128xf32>
    tpu.vector_store %arg14[%c0_33, %c0_34], %43 {strides = array<i32>} : memref<128x128xf32, #tpu.memory_space<vmem>>, vector<128x128xf32>,
    %c0_35 = arith.constant 0 : index
    %c0_36 = arith.constant 0 : index
    %45 = vector.load %arg15[%c0_35, %c0_36] : memref<128x128xf32, #tpu.memory_space<vmem>>, vector<128x128xf32>
    tpu.vector_store %arg15[%c0_35, %c0_36], %16 {strides = array<i32>} : memref<128x128xf32, #tpu.memory_space<vmem>>, vector<128x128xf32>,
    %c0_37 = arith.constant 0 : index
    %c0_38 = arith.constant 0 : index
    %46 = vector.load %arg16[%c0_37, %c0_38] : memref<128x128xf32, #tpu.memory_space<vmem>>, vector<128x128xf32>
    tpu.vector_store %arg16[%c0_37, %c0_38], %21 {strides = array<i32>} : memref<128x128xf32, #tpu.memory_space<vmem>>, vector<128x128xf32>,
    return
  }
  func.func @transform_0(%arg0: i32) -> (i32, i32) {
    %c0_i32 = arith.constant 0 : i32
    %c0_i32_0 = arith.constant 0 : i32
    return %arg0, %c0_i32 : i32, i32
  }
  func.func @transform_1(%arg0: i32) -> (i32, i32) {
    %c0_i32 = arith.constant 0 : i32
    %c0_i32_0 = arith.constant 0 : i32
    return %arg0, %c0_i32 : i32, i32
  }
  func.func @transform_2(%arg0: i32) -> (i32, i32) {
    %c0_i32 = arith.constant 0 : i32
    %c0_i32_0 = arith.constant 0 : i32
    return %arg0, %c0_i32 : i32, i32
  }
  func.func @transform_3(%arg0: i32) -> (i32, i32) {
    %c0_i32 = arith.constant 0 : i32
    %c0_i32_0 = arith.constant 0 : i32
    %c0_i32_1 = arith.constant 0 : i32
    return %c0_i32, %c0_i32_0 : i32, i32
  }
  func.func @transform_4(%arg0: i32) -> (i32, i32) {
    %c0_i32 = arith.constant 0 : i32
    %c0_i32_0 = arith.constant 0 : i32
    %c0_i32_1 = arith.constant 0 : i32
    return %c0_i32, %c0_i32_0 : i32, i32
  }
  func.func @transform_5(%arg0: i32) -> (i32, i32) {
    %c0_i32 = arith.constant 0 : i32
    %c0_i32_0 = arith.constant 0 : i32
    %c0_i32_1 = arith.constant 0 : i32
    return %c0_i32, %c0_i32_0 : i32, i32
  }
  func.func @transform_6(%arg0: i32) -> (i32, i32) {
    %c0_i32 = arith.constant 0 : i32
    %c0_i32_0 = arith.constant 0 : i32
    %c0_i32_1 = arith.constant 0 : i32
    return %c0_i32, %c0_i32_0 : i32, i32
  }
  func.func @transform_7(%arg0: i32) -> (i32, i32) {
    %c0_i32 = arith.constant 0 : i32
    %c0_i32_0 = arith.constant 0 : i32
    %c0_i32_1 = arith.constant 0 : i32
    return %c0_i32, %c0_i32_0 : i32, i32
  }
  func.func @transform_8(%arg0: i32) -> (i32, i32) {
    %c0_i32 = arith.constant 0 : i32
    %c0_i32_0 = arith.constant 0 : i32
    %c0_i32_1 = arith.constant 0 : i32
    return %c0_i32, %c0_i32_0 : i32, i32
  }
  func.func @transform_9(%arg0: i32) -> (i32, i32) {
    %c0_i32 = arith.constant 0 : i32
    %c0_i32_0 = arith.constant 0 : i32
    %c0_i32_1 = arith.constant 0 : i32
    return %c0_i32, %c0_i32_0 : i32, i32
  }
  func.func @transform_10(%arg0: i32) -> (i32, i32) {
    %c0_i32 = arith.constant 0 : i32
    %c0_i32_0 = arith.constant 0 : i32
    %c0_i32_1 = arith.constant 0 : i32
    return %c0_i32, %c0_i32_0 : i32, i32
  }
  func.func @transform_11(%arg0: i32) -> (i32, i32) {
    %c0_i32 = arith.constant 0 : i32
    %c0_i32_0 = arith.constant 0 : i32
    %c0_i32_1 = arith.constant 0 : i32
    return %c0_i32, %c0_i32_0 : i32, i32
  }
  func.func @transform_12(%arg0: i32) -> (i32, i32) {
    %c0_i32 = arith.constant 0 : i32
    %c0_i32_0 = arith.constant 0 : i32
    %c0_i32_1 = arith.constant 0 : i32
    return %c0_i32, %c0_i32_0 : i32, i32
  }
  func.func @transform_13(%arg0: i32) -> (i32, i32) {
    %c0_i32 = arith.constant 0 : i32
    %c0_i32_0 = arith.constant 0 : i32
    return %arg0, %c0_i32 : i32, i32
  }
  func.func @transform_14(%arg0: i32) -> (i32, i32) {
    %c0_i32 = arith.constant 0 : i32
    %c0_i32_0 = arith.constant 0 : i32
    return %arg0, %c0_i32 : i32, i32
  }
  func.func @transform_15(%arg0: i32) -> (i32, i32) {
    %c0_i32 = arith.constant 0 : i32
    %c0_i32_0 = arith.constant 0 : i32
    return %arg0, %c0_i32 : i32, i32
  }
}

</mosaic_0001>

<llo_original>
// kernel: tpu_custom_call.1
$region0: #{tpu_custom_call.1}
  #allocation0 [shape = 'u32[]', space=smem, size = 0x4, offset = 0x4, fixed_abs, tag = 'smem constant byte address 0x4 - core index']
  #allocation1 [shape = 'u32[144,128]{1,0:T(1,128)}', space=vmem, size = 0x12000, scoped, tag = 'internal scratch']
  %s0 = inlined_call_operand.hbm [shape: f32[256,128], index: 0, kind: input, shape index: {}]
  %s1 = inlined_call_operand.hbm [shape: f32[256,128], index: 1, kind: input, shape index: {}]
  %s2 = inlined_call_operand.hbm [shape: f32[256,128], index: 2, kind: input, shape index: {}]
  %s3 = inlined_call_operand.hbm [shape: bf16[128,128], index: 3, kind: input, shape index: {}]
  %s4 = inlined_call_operand.vmem [shape: f32[1,128], index: 4, kind: input, shape index: {}]
  %s5 = inlined_call_operand.hbm [shape: bf16[128,128], index: 5, kind: input, shape index: {}]
  %s6 = inlined_call_operand.vmem [shape: f32[1,128], index: 6, kind: input, shape index: {}]
  %s7 = inlined_call_operand.hbm [shape: bf16[128,128], index: 7, kind: input, shape index: {}]
  %s8 = inlined_call_operand.vmem [shape: f32[1,128], index: 8, kind: input, shape index: {}]
  %s9 = inlined_call_operand.hbm [shape: bf16[128,128], index: 9, kind: input, shape index: {}]
  %s10 = inlined_call_operand.vmem [shape: f32[1,128], index: 10, kind: input, shape index: {}]
  %s11 = inlined_call_operand.hbm [shape: bf16[128,128], index: 11, kind: input, shape index: {}]
  %s12 = inlined_call_operand.vmem [shape: f32[1,128], index: 12, kind: input, shape index: {}]
  %s13 = inlined_call_operand.hbm [shape: f32[256,128], index: 13, kind: output, shape index: {0}]
  %s14 = inlined_call_operand.hbm [shape: f32[256,128], index: 14, kind: output, shape index: {1}]
  %s15 = inlined_call_operand.hbm [shape: f32[256,128], index: 15, kind: output, shape index: {2}]
  %16 = xla_tuple %s13, %s14, %s15
  %s17 = sld [smem:[#allocation0]]
  $region133: #{tpu_custom_call.1} parent=0
    _
  %s19 = ssub.s32 1, %s17
  %s20 = scalar_select 0, %s19, %s17
  $region1: #{tpu_custom_call.1} parent=0
    #allocation2 [shape = 'u8[131072]{0}', space=vmem, size = 0x20000, scoped, tag = 'input window, operand 0']
    #allocation3 [shape = 's32[2]{0}', space=sflag, size = 0x8, scoped, tag = 'scoped memory for tpu_custom_call.1']
    #allocation4 [shape = 's32[2]{0}', space=sflag, size = 0x8, scoped, tag = 'scoped memory for tpu_custom_call.1']
    #allocation5 [shape = 'u8[131072]{0}', space=vmem, size = 0x20000, scoped, tag = 'input window, operand 1']
    #allocation6 [shape = 's32[2]{0}', space=sflag, size = 0x8, scoped, tag = 'scoped memory for tpu_custom_call.1']
    #allocation7 [shape = 'u8[131072]{0}', space=vmem, size = 0x20000, scoped, tag = 'input window, operand 2']
    #allocation8 [shape = 'u8[32768]{0}', space=vmem, size = 0x8000, scoped, tag = 'input window, operand 3, single buffered']
    #allocation9 [shape = 's32[1]{0}', space=sflag, size = 0x4, scoped, tag = 'scoped memory for tpu_custom_call.1']
    #allocation10 [shape = 'u8[32768]{0}', space=vmem, size = 0x8000, scoped, tag = 'input window, operand 5, single buffered']
    #allocation11 [shape = 'u8[32768]{0}', space=vmem, size = 0x8000, scoped, tag = 'input window, operand 7, single buffered']
    #allocation12 [shape = 's32[1]{0}', space=sflag, size = 0x4, scoped, tag = 'scoped memory for tpu_custom_call.1']
    #allocation13 [shape = 'u8[32768]{0}', space=vmem, size = 0x8000, scoped, tag = 'input window, operand 9, single buffered']
    #allocation14 [shape = 'u8[32768]{0}', space=vmem, size = 0x8000, scoped, tag = 'input window, operand 11, single buffered']
    #allocation15 [shape = 's32[1]{0}', space=sflag, size = 0x4, scoped, tag = 'scoped memory for tpu_custom_call.1']
    #allocation16 [shape = 'u8[131072]{0}', space=vmem, size = 0x20000, scoped, tag = 'output window, operand 0']
    #allocation17 [shape = 'u8[131072]{0}', space=vmem, size = 0x20000, scoped, tag = 'output window, operand 1']
    #allocation18 [shape = 's32[2]{0}', space=sflag, size = 0x8, scoped, tag = 'scoped memory for tpu_custom_call.1']
    #allocation19 [shape = 'u8[131072]{0}', space=vmem, size = 0x20000, scoped, tag = 'output window, operand 2']
    %21 = vsyncpa [#allocation3], 0
    %s22 = scalar_lea.sflag [#allocation3], 1
    %23 = vsyncpa %s22, 0
    %24 = vsyncpa [#allocation6], 0
    %s25 = scalar_lea.sflag [#allocation6], 1
    %26 = vsyncpa %s25, 0
    %27 = vsyncpa [#allocation9], 0
    %28 = vsyncpa [#allocation12], 0
    %29 = vsyncpa [#allocation15], 0
    %30 = vsyncpa [#allocation4], 0
    %s31 = scalar_lea.sflag [#allocation4], 1
    %32 = vsyncpa %s31, 0
    %33 = vsyncpa [#allocation18], 0
    %s34 = scalar_lea.sflag [#allocation18], 1
    %35 = vsyncpa %s34, 0
    loop: start=0, step=1, limit=4
    $region2: #{tpu_custom_call.1} parent=1 // loop_pre_header
      _
    $region3: #{tpu_custom_call.1} parent=1 // loop_header
      %s37 = sphi 0, %s41
      %p38 = scmp.ge.s32.totalorder %s37, 4
      %s47 = sphi 0, %s49
      %s50 = sphi 0, %s47
      %s51 = sphi 0, %s50
      %s67 = sphi 0, %s51
      %s73 = sphi 0, %s75
      %s76 = sphi 0, %s73
      %s77 = sphi 0, %s76
      %s93 = sphi 0, %s77
      %s99 = sphi 0, %s101
      %s102 = sphi 0, %s99
      %s103 = sphi 0, %s102
      %s119 = sphi 0, %s103
      %s123 = sphi 0, %s123
      %s125 = sphi 0, %s123
      %s126 = sphi 0, %s125
      %s140 = sphi 0, %s126
      %s144 = sphi 0, %s144
      %s146 = sphi 0, %s144
      %s147 = sphi 0, %s146
      %s161 = sphi 0, %s147
      %s165 = sphi 0, %s165
      %s167 = sphi 0, %s165
      %s168 = sphi 0, %s167
      %s182 = sphi 0, %s168
      %s186 = sphi 0, %s186
      %s188 = sphi 0, %s186
      %s189 = sphi 0, %s188
      %s203 = sphi 0, %s189
      %s207 = sphi 0, %s207
      %s209 = sphi 0, %s207
      %s210 = sphi 0, %s209
      %s224 = sphi 0, %s210
      %s228 = sphi 0, %s228
      %s230 = sphi 0, %s228
      %s231 = sphi 0, %s230
      %s245 = sphi 0, %s231
      %s249 = sphi 0, %s249
      %s251 = sphi 0, %s249
      %s252 = sphi 0, %s251
      %s266 = sphi 0, %s252
      %s270 = sphi 0, %s270
      %s272 = sphi 0, %s270
      %s273 = sphi 0, %s272
      %s287 = sphi 0, %s273
      %s291 = sphi 0, %s291
      %s293 = sphi 0, %s291
      %s294 = sphi 0, %s293
      %s308 = sphi 0, %s294
      %s312 = sphi 0, %s312
      %s314 = sphi 0, %s312
      %s315 = sphi 0, %s314
      %s329 = sphi 0, %s315
      %s335 = sphi 0, %s337
      %s338 = sphi 0, %s335
      %s339 = sphi 0, %s338
      %s355 = sphi 0, %s339
      %s361 = sphi 0, %s363
      %s364 = sphi 0, %s361
      %s365 = sphi 0, %s364
      %s381 = sphi 0, %s365
      %s387 = sphi 0, %s389
      %s390 = sphi 0, %s387
      %s391 = sphi 0, %s390
      %s407 = sphi 0, %s391
    $region4: #{tpu_custom_call.1} parent=1 // loop_header_branch
      %40 = sbr.rel (%p38) target = $region8
    $region5: #{tpu_custom_call.1} parent=1 // loop_body
      %s42 = ssub.s32 %s37, 1
      %s43 = ssub.s32 %s37, 2
      %s44 = sadd.s32 %s37, 1
      %s45 = ssub.s32 %s37, %s44
      %p46 = scmp.eq.s32.totalorder %s45, 0
      %s48 = sadd.s32 %s47, 1
      %s49 = scalar_select %p46, %s47, %s48
      %p52 = pneg %p46
      %p53 = scmp.eq.s32.totalorder %s37, 1
      %p54 = por %p52, %p53
      %p55 = scmp.ne.s32.totalorder %s47, %s50
      %p56 = scmp.eq.s32.totalorder %s37, 0
      %p57 = por %p55, %p56
      %p58 = scmp.ne.s32.totalorder %s47, %s50
      %p59 = scmp.eq.s32.totalorder %s42, 1
      %p60 = por %p58, %p59
      %p61 = scmp.ne.s32.totalorder %s50, %s51
      %p62 = scmp.eq.s32.totalorder %s42, 0
      %p63 = por %p61, %p62
      %p64 = scmp.ne.s32.totalorder %s50, %s51
      %p65 = scmp.eq.s32.totalorder %s43, 1
      %p66 = por %p64, %p65
      %p68 = scmp.ne.s32.totalorder %s51, %s67
      %p69 = scmp.eq.s32.totalorder %s43, 0
      %p70 = por %p68, %p69
      %s71 = ssub.s32 %s37, %s44
      %p72 = scmp.eq.s32.totalorder %s71, 0
      %s74 = sadd.s32 %s73, 1
      %s75 = scalar_select %p72, %s73, %s74
      %p78 = pneg %p72
      %p79 = scmp.eq.s32.totalorder %s37, 1
      %p80 = por %p78, %p79
      %p81 = scmp.ne.s32.totalorder %s73, %s76
      %p82 = scmp.eq.s32.totalorder %s37, 0
      %p83 = por %p81, %p82
      %p84 = scmp.ne.s32.totalorder %s73, %s76
      %p85 = scmp.eq.s32.totalorder %s42, 1
      %p86 = por %p84, %p85
      %p87 = scmp.ne.s32.totalorder %s76, %s77
      %p88 = scmp.eq.s32.totalorder %s42, 0
      %p89 = por %p87, %p88
      %p90 = scmp.ne.s32.totalorder %s76, %s77
      %p91 = scmp.eq.s32.totalorder %s43, 1
      %p92 = por %p90, %p91
      %p94 = scmp.ne.s32.totalorder %s77, %s93
      %p95 = scmp.eq.s32.totalorder %s43, 0
      %p96 = por %p94, %p95
      %s97 = ssub.s32 %s37, %s44
      %p98 = scmp.eq.s32.totalorder %s97, 0
      %s100 = sadd.s32 %s99, 1
      %s101 = scalar_select %p98, %s99, %s100
      %p104 = pneg %p98
      %p105 = scmp.eq.s32.totalorder %s37, 1
      %p106 = por %p104, %p105
      %p107 = scmp.ne.s32.totalorder %s99, %s102
      %p108 = scmp.eq.s32.totalorder %s37, 0
      %p109 = por %p107, %p108
      %p110 = scmp.ne.s32.totalorder %s99, %s102
      %p111 = scmp.eq.s32.totalorder %s42, 1
      %p112 = por %p110, %p111
      %p113 = scmp.ne.s32.totalorder %s102, %s103
      %p114 = scmp.eq.s32.totalorder %s42, 0
      %p115 = por %p113, %p114
      %p116 = scmp.ne.s32.totalorder %s102, %s103
      %p117 = scmp.eq.s32.totalorder %s43, 1
      %p118 = por %p116, %p117
      %p120 = scmp.ne.s32.totalorder %s103, %s119
      %p121 = scmp.eq.s32.totalorder %s43, 0
      %p122 = por %p120, %p121
      %s124 = sadd.s32 %s123, 1
      %p127 = scmp.eq.s32.totalorder %s37, 1
      %p128 = scmp.ne.s32.totalorder %s123, %s125
      %p129 = scmp.eq.s32.totalorder %s37, 0
      %p130 = por %p128, %p129
      %p131 = scmp.ne.s32.totalorder %s123, %s125
      %p132 = scmp.eq.s32.totalorder %s42, 1
      %p133 = por %p131, %p132
      %p134 = scmp.ne.s32.totalorder %s125, %s126
      %p135 = scmp.eq.s32.totalorder %s42, 0
      %p136 = por %p134, %p135
      %p137 = scmp.ne.s32.totalorder %s125, %s126
      %p138 = scmp.eq.s32.totalorder %s43, 1
      %p139 = por %p137, %p138
      %p141 = scmp.ne.s32.totalorder %s126, %s140
      %p142 = scmp.eq.s32.totalorder %s43, 0
      %p143 = por %p141, %p142
      %s145 = sadd.s32 %s144, 1
      %p148 = scmp.eq.s32.totalorder %s37, 1
      %p149 = scmp.ne.s32.totalorder %s144, %s146
      %p150 = scmp.eq.s32.totalorder %s37, 0
      %p151 = por %p149, %p150
      %p152 = scmp.ne.s32.totalorder %s144, %s146
      %p153 = scmp.eq.s32.totalorder %s42, 1
      %p154 = por %p152, %p153
      %p155 = scmp.ne.s32.totalorder %s146, %s147
      %p156 = scmp.eq.s32.totalorder %s42, 0
      %p157 = por %p155, %p156
      %p158 = scmp.ne.s32.totalorder %s146, %s147
      %p159 = scmp.eq.s32.totalorder %s43, 1
      %p160 = por %p158, %p159
      %p162 = scmp.ne.s32.totalorder %s147, %s161
      %p163 = scmp.eq.s32.totalorder %s43, 0
      %p164 = por %p162, %p163
      %s166 = sadd.s32 %s165, 1
      %p169 = scmp.eq.s32.totalorder %s37, 1
      %p170 = scmp.ne.s32.totalorder %s165, %s167
      %p171 = scmp.eq.s32.totalorder %s37, 0
      %p172 = por %p170, %p171
      %p173 = scmp.ne.s32.totalorder %s165, %s167
      %p174 = scmp.eq.s32.totalorder %s42, 1
      %p175 = por %p173, %p174
      %p176 = scmp.ne.s32.totalorder %s167, %s168
      %p177 = scmp.eq.s32.totalorder %s42, 0
      %p178 = por %p176, %p177
      %p179 = scmp.ne.s32.totalorder %s167, %s168
      %p180 = scmp.eq.s32.totalorder %s43, 1
      %p181 = por %p179, %p180
      %p183 = scmp.ne.s32.totalorder %s168, %s182
      %p184 = scmp.eq.s32.totalorder %s43, 0
      %p185 = por %p183, %p184
      %s187 = sadd.s32 %s186, 1
      %p190 = scmp.eq.s32.totalorder %s37, 1
      %p191 = scmp.ne.s32.totalorder %s186, %s188
      %p192 = scmp.eq.s32.totalorder %s37, 0
      %p193 = por %p191, %p192
      %p194 = scmp.ne.s32.totalorder %s186, %s188
      %p195 = scmp.eq.s32.totalorder %s42, 1
      %p196 = por %p194, %p195
      %p197 = scmp.ne.s32.totalorder %s188, %s189
      %p198 = scmp.eq.s32.totalorder %s42, 0
      %p199 = por %p197, %p198
      %p200 = scmp.ne.s32.totalorder %s188, %s189
      %p201 = scmp.eq.s32.totalorder %s43, 1
      %p202 = por %p200, %p201
      %p204 = scmp.ne.s32.totalorder %s189, %s203
      %p205 = scmp.eq.s32.totalorder %s43, 0
      %p206 = por %p204, %p205
      %s208 = sadd.s32 %s207, 1
      %p211 = scmp.eq.s32.totalorder %s37, 1
      %p212 = scmp.ne.s32.totalorder %s207, %s209
      %p213 = scmp.eq.s32.totalorder %s37, 0
      %p214 = por %p212, %p213
      %p215 = scmp.ne.s32.totalorder %s207, %s209
      %p216 = scmp.eq.s32.totalorder %s42, 1
      %p217 = por %p215, %p216
      %p218 = scmp.ne.s32.totalorder %s209, %s210
      %p219 = scmp.eq.s32.totalorder %s42, 0
      %p220 = por %p218, %p219
      %p221 = scmp.ne.s32.totalorder %s209, %s210
      %p222 = scmp.eq.s32.totalorder %s43, 1
      %p223 = por %p221, %p222
      %p225 = scmp.ne.s32.totalorder %s210, %s224
      %p226 = scmp.eq.s32.totalorder %s43, 0
      %p227 = por %p225, %p226
      %s229 = sadd.s32 %s228, 1
      %p232 = scmp.eq.s32.totalorder %s37, 1
      %p233 = scmp.ne.s32.totalorder %s228, %s230
      %p234 = scmp.eq.s32.totalorder %s37, 0
      %p235 = por %p233, %p234
      %p236 = scmp.ne.s32.totalorder %s228, %s230
      %p237 = scmp.eq.s32.totalorder %s42, 1
      %p238 = por %p236, %p237
      %p239 = scmp.ne.s32.totalorder %s230, %s231
      %p240 = scmp.eq.s32.totalorder %s42, 0
      %p241 = por %p239, %p240
      %p242 = scmp.ne.s32.totalorder %s230, %s231
      %p243 = scmp.eq.s32.totalorder %s43, 1
      %p244 = por %p242, %p243
      %p246 = scmp.ne.s32.totalorder %s231, %s245
      %p247 = scmp.eq.s32.totalorder %s43, 0
      %p248 = por %p246, %p247
      %s250 = sadd.s32 %s249, 1
      %p253 = scmp.eq.s32.totalorder %s37, 1
      %p254 = scmp.ne.s32.totalorder %s249, %s251
      %p255 = scmp.eq.s32.totalorder %s37, 0
      %p256 = por %p254, %p255
      %p257 = scmp.ne.s32.totalorder %s249, %s251
      %p258 = scmp.eq.s32.totalorder %s42, 1
      %p259 = por %p257, %p258
      %p260 = scmp.ne.s32.totalorder %s251, %s252
      %p261 = scmp.eq.s32.totalorder %s42, 0
      %p262 = por %p260, %p261
      %p263 = scmp.ne.s32.totalorder %s251, %s252
      %p264 = scmp.eq.s32.totalorder %s43, 1
      %p265 = por %p263, %p264
      %p267 = scmp.ne.s32.totalorder %s252, %s266
      %p268 = scmp.eq.s32.totalorder %s43, 0
      %p269 = por %p267, %p268
      %s271 = sadd.s32 %s270, 1
      %p274 = scmp.eq.s32.totalorder %s37, 1
      %p275 = scmp.ne.s32.totalorder %s270, %s272
      %p276 = scmp.eq.s32.totalorder %s37, 0
      %p277 = por %p275, %p276
      %p278 = scmp.ne.s32.totalorder %s270, %s272
      %p279 = scmp.eq.s32.totalorder %s42, 1
      %p280 = por %p278, %p279
      %p281 = scmp.ne.s32.totalorder %s272, %s273
      %p282 = scmp.eq.s32.totalorder %s42, 0
      %p283 = por %p281, %p282
      %p284 = scmp.ne.s32.totalorder %s272, %s273
      %p285 = scmp.eq.s32.totalorder %s43, 1
      %p286 = por %p284, %p285
      %p288 = scmp.ne.s32.totalorder %s273, %s287
      %p289 = scmp.eq.s32.totalorder %s43, 0
      %p290 = por %p288, %p289
      %s292 = sadd.s32 %s291, 1
      %p295 = scmp.eq.s32.totalorder %s37, 1
      %p296 = scmp.ne.s32.totalorder %s291, %s293
      %p297 = scmp.eq.s32.totalorder %s37, 0
      %p298 = por %p296, %p297
      %p299 = scmp.ne.s32.totalorder %s291, %s293
      %p300 = scmp.eq.s32.totalorder %s42, 1
      %p301 = por %p299, %p300
      %p302 = scmp.ne.s32.totalorder %s293, %s294
      %p303 = scmp.eq.s32.totalorder %s42, 0
      %p304 = por %p302, %p303
      %p305 = scmp.ne.s32.totalorder %s293, %s294
      %p306 = scmp.eq.s32.totalorder %s43, 1
      %p307 = por %p305, %p306
      %p309 = scmp.ne.s32.totalorder %s294, %s308
      %p310 = scmp.eq.s32.totalorder %s43, 0
      %p311 = por %p309, %p310
      %s313 = sadd.s32 %s312, 1
      %p316 = scmp.eq.s32.totalorder %s37, 1
      %p317 = scmp.ne.s32.totalorder %s312, %s314
      %p318 = scmp.eq.s32.totalorder %s37, 0
      %p319 = por %p317, %p318
      %p320 = scmp.ne.s32.totalorder %s312, %s314
      %p321 = scmp.eq.s32.totalorder %s42, 1
      %p322 = por %p320, %p321
      %p323 = scmp.ne.s32.totalorder %s314, %s315
      %p324 = scmp.eq.s32.totalorder %s42, 0
      %p325 = por %p323, %p324
      %p326 = scmp.ne.s32.totalorder %s314, %s315
      %p327 = scmp.eq.s32.totalorder %s43, 1
      %p328 = por %p326, %p327
      %p330 = scmp.ne.s32.totalorder %s315, %s329
      %p331 = scmp.eq.s32.totalorder %s43, 0
      %p332 = por %p330, %p331
      %s333 = ssub.s32 %s37, %s44
      %p334 = scmp.eq.s32.totalorder %s333, 0
      %s336 = sadd.s32 %s335, 1
      %s337 = scalar_select %p334, %s335, %s336
      %p340 = pneg %p334
      %p341 = scmp.eq.s32.totalorder %s37, 1
      %p342 = por %p340, %p341
      %p343 = scmp.ne.s32.totalorder %s335, %s338
      %p344 = scmp.eq.s32.totalorder %s37, 0
      %p345 = por %p343, %p344
      %p346 = scmp.ne.s32.totalorder %s335, %s338
      %p347 = scmp.eq.s32.totalorder %s42, 1
      %p348 = por %p346, %p347
      %p349 = scmp.ne.s32.totalorder %s338, %s339
      %p350 = scmp.eq.s32.totalorder %s42, 0
      %p351 = por %p349, %p350
      %p352 = scmp.ne.s32.totalorder %s338, %s339
      %p353 = scmp.eq.s32.totalorder %s43, 1
      %p354 = por %p352, %p353
      %p356 = scmp.ne.s32.totalorder %s339, %s355
      %p357 = scmp.eq.s32.totalorder %s43, 0
      %p358 = por %p356, %p357
      %s359 = ssub.s32 %s37, %s44
      %p360 = scmp.eq.s32.totalorder %s359, 0
      %s362 = sadd.s32 %s361, 1
      %s363 = scalar_select %p360, %s361, %s362
      %p366 = pneg %p360
      %p367 = scmp.eq.s32.totalorder %s37, 1
      %p368 = por %p366, %p367
      %p369 = scmp.ne.s32.totalorder %s361, %s364
      %p370 = scmp.eq.s32.totalorder %s37, 0
      %p371 = por %p369, %p370
      %p372 = scmp.ne.s32.totalorder %s361, %s364
      %p373 = scmp.eq.s32.totalorder %s42, 1
      %p374 = por %p372, %p373
      %p375 = scmp.ne.s32.totalorder %s364, %s365
      %p376 = scmp.eq.s32.totalorder %s42, 0
      %p377 = por %p375, %p376
      %p378 = scmp.ne.s32.totalorder %s364, %s365
      %p379 = scmp.eq.s32.totalorder %s43, 1
      %p380 = por %p378, %p379
      %p382 = scmp.ne.s32.totalorder %s365, %s381
      %p383 = scmp.eq.s32.totalorder %s43, 0
      %p384 = por %p382, %p383
      %s385 = ssub.s32 %s37, %s44
      %p386 = scmp.eq.s32.totalorder %s385, 0
      %s388 = sadd.s32 %s387, 1
      %s389 = scalar_select %p386, %s387, %s388
      %p392 = pneg %p386
      %p393 = scmp.eq.s32.totalorder %s37, 1
      %p394 = por %p392, %p393
      %p395 = scmp.ne.s32.totalorder %s387, %s390
      %p396 = scmp.eq.s32.totalorder %s37, 0
      %p397 = por %p395, %p396
      %p398 = scmp.ne.s32.totalorder %s387, %s390
      %p399 = scmp.eq.s32.totalorder %s42, 1
      %p400 = por %p398, %p399
      %p401 = scmp.ne.s32.totalorder %s390, %s391
      %p402 = scmp.eq.s32.totalorder %s42, 0
      %p403 = por %p401, %p402
      %p404 = scmp.ne.s32.totalorder %s390, %s391
      %p405 = scmp.eq.s32.totalorder %s43, 1
      %p406 = por %p404, %p405
      %p408 = scmp.ne.s32.totalorder %s391, %s407
      %p409 = scmp.eq.s32.totalorder %s43, 0
      %p410 = por %p408, %p409
      %p411 = scmp.le.s32.totalorder 1, %s37
      %p412 = scmp.lt.s32.totalorder %s37, 3
      %p413 = pnand %p411, %p412
      %p414 = pneg %p413
      // Predicated region
      $region9: #{tpu_custom_call.1} parent=5 // pred_check
        _
      $region10: #{tpu_custom_call.1} parent=5 // pred_check_branch
        %416 = sbr.rel (%p413) target = $region12
      $region11: #{tpu_custom_call.1} parent=5 // pred_region
        %s417 = ssub.s32 %s37, 1
        // Predicated region
        $region13: #{tpu_custom_call.1} parent=11 // pred_check
          %p418 = pneg %p136
        $region14: #{tpu_custom_call.1} parent=11 // pred_check_branch
          %420 = sbr.rel (%p418) target = $region16
        $region15: #{tpu_custom_call.1} parent=11 // pred_region
          %s422 = ssub.s32 1024, 1024
          %423 = vsyncadd [#allocation9], %s422
          %s424 = sshll.u32 [#allocation8], 4
          %s425 = int_to_ptr.vmem [resolvable:$true] %s424
          %430 = dma.hbm_to_vmem [thread:$0]  %s3, 1024, %s425, [#allocation9], 64, 64, 4
        $region16: #{tpu_custom_call.1} parent=11 // pred_fallthru
          _
        // Predicated region
        $region17: #{tpu_custom_call.1} parent=11 // pred_check
          %p431 = pneg %p157
        $region18: #{tpu_custom_call.1} parent=11 // pred_check_branch
          %433 = sbr.rel (%p431) target = $region20
        $region19: #{tpu_custom_call.1} parent=11 // pred_region
          _
        $region20: #{tpu_custom_call.1} parent=11 // pred_fallthru
          _
        // Predicated region
        $region21: #{tpu_custom_call.1} parent=11 // pred_check
          %p434 = pneg %p178
        $region22: #{tpu_custom_call.1} parent=11 // pred_check_branch
          %436 = sbr.rel (%p434) target = $region24
        $region23: #{tpu_custom_call.1} parent=11 // pred_region
          %s438 = ssub.s32 1024, 1024
          %439 = vsyncadd [#allocation9], %s438
          %s440 = sshll.u32 [#allocation10], 4
          %s441 = int_to_ptr.vmem [resolvable:$true] %s440
          %446 = dma.hbm_to_vmem [thread:$0]  %s5, 1024, %s441, [#allocation9], 64, 64, 4
        $region24: #{tpu_custom_call.1} parent=11 // pred_fallthru
          _
        // Predicated region
        $region25: #{tpu_custom_call.1} parent=11 // pred_check
          %p447 = pneg %p199
        $region26: #{tpu_custom_call.1} parent=11 // pred_check_branch
          %449 = sbr.rel (%p447) target = $region28
        $region27: #{tpu_custom_call.1} parent=11 // pred_region
          _
        $region28: #{tpu_custom_call.1} parent=11 // pred_fallthru
          _
        // Predicated region
        $region29: #{tpu_custom_call.1} parent=11 // pred_check
          %p450 = pneg %p220
        $region30: #{tpu_custom_call.1} parent=11 // pred_check_branch
          %452 = sbr.rel (%p450) target = $region32
        $region31: #{tpu_custom_call.1} parent=11 // pred_region
          %s454 = ssub.s32 1024, 1024
          %455 = vsyncadd [#allocation12], %s454
          %s456 = sshll.u32 [#allocation11], 4
          %s457 = int_to_ptr.vmem [resolvable:$true] %s456
          %462 = dma.hbm_to_vmem [thread:$0]  %s7, 1024, %s457, [#allocation12], 64, 64, 4
        $region32: #{tpu_custom_call.1} parent=11 // pred_fallthru
          _
        // Predicated region
        $region33: #{tpu_custom_call.1} parent=11 // pred_check
          %p463 = pneg %p241
        $region34: #{tpu_custom_call.1} parent=11 // pred_check_branch
          %465 = sbr.rel (%p463) target = $region36
        $region35: #{tpu_custom_call.1} parent=11 // pred_region
          _
        $region36: #{tpu_custom_call.1} parent=11 // pred_fallthru
          _
        // Predicated region
        $region37: #{tpu_custom_call.1} parent=11 // pred_check
          %p466 = pneg %p262
        $region38: #{tpu_custom_call.1} parent=11 // pred_check_branch
          %468 = sbr.rel (%p466) target = $region40
        $region39: #{tpu_custom_call.1} parent=11 // pred_region
          %s470 = ssub.s32 1024, 1024
          %471 = vsyncadd [#allocation12], %s470
          %s472 = sshll.u32 [#allocation13], 4
          %s473 = int_to_ptr.vmem [resolvable:$true] %s472
          %478 = dma.hbm_to_vmem [thread:$0]  %s9, 1024, %s473, [#allocation12], 64, 64, 4
        $region40: #{tpu_custom_call.1} parent=11 // pred_fallthru
          _
        // Predicated region
        $region41: #{tpu_custom_call.1} parent=11 // pred_check
          %p479 = pneg %p283
        $region42: #{tpu_custom_call.1} parent=11 // pred_check_branch
          %481 = sbr.rel (%p479) target = $region44
        $region43: #{tpu_custom_call.1} parent=11 // pred_region
          _
        $region44: #{tpu_custom_call.1} parent=11 // pred_fallthru
          _
        // Predicated region
        $region45: #{tpu_custom_call.1} parent=11 // pred_check
          %p482 = pneg %p304
        $region46: #{tpu_custom_call.1} parent=11 // pred_check_branch
          %484 = sbr.rel (%p482) target = $region48
        $region47: #{tpu_custom_call.1} parent=11 // pred_region
          %s486 = ssub.s32 1024, 1024
          %487 = vsyncadd [#allocation15], %s486
          %s488 = sshll.u32 [#allocation14], 4
          %s489 = int_to_ptr.vmem [resolvable:$true] %s488
          %494 = dma.hbm_to_vmem [thread:$0]  %s11, 1024, %s489, [#allocation15], 64, 64, 4
        $region48: #{tpu_custom_call.1} parent=11 // pred_fallthru
          _
        // Predicated region
        $region49: #{tpu_custom_call.1} parent=11 // pred_check
          %p495 = pneg %p325
        $region50: #{tpu_custom_call.1} parent=11 // pred_check_branch
          %497 = sbr.rel (%p495) target = $region52
        $region51: #{tpu_custom_call.1} parent=11 // pred_region
          _
        $region52: #{tpu_custom_call.1} parent=11 // pred_fallthru
          _
      $region12: #{tpu_custom_call.1} parent=5 // pred_fallthru
        _
      %p498 = scmp.lt.s32.totalorder %s37, 2
      // Predicated region
      $region53: #{tpu_custom_call.1} parent=5 // pred_check
        %p499 = pneg %p498
      $region54: #{tpu_custom_call.1} parent=5 // pred_check_branch
        %501 = sbr.rel (%p499) target = $region56
      $region55: #{tpu_custom_call.1} parent=5 // pred_region
        // Predicated region
        $region57: #{tpu_custom_call.1} parent=55 // pred_check
          %p502 = pneg %p57
        $region58: #{tpu_custom_call.1} parent=55 // pred_check_branch
          %504 = sbr.rel (%p502) target = $region60
        $region59: #{tpu_custom_call.1} parent=55 // pred_region
          %s505 = sand.u32 %s47, 1
          %s506 = scalar_lea.sflag [#allocation3], %s505
          %s507 = sand.u32 %s47, 1
          %s508 = smul.addr %s507, 128
          %s509 = scalar_lea.vmem [#allocation2], %s508
          %s510 = smul.u32 16, %s37
          %s512 = ssub.s32 2048, 2048
          %513 = vsyncadd %s506, %s512
          %s514 = smul.addr %s510, 128
          %s515 = scalar_lea.hbm %s0, %s514
          %s516 = sshll.u32 %s509, 4
          %s517 = int_to_ptr.vmem [resolvable:$true] %s516
          %522 = dma.hbm_to_vmem [thread:$0]  %s515, 2048, %s517, %s506, 128, 128, 8
        $region60: #{tpu_custom_call.1} parent=55 // pred_fallthru
          _
        // Predicated region
        $region61: #{tpu_custom_call.1} parent=55 // pred_check
          %p523 = pneg %p83
        $region62: #{tpu_custom_call.1} parent=55 // pred_check_branch
          %525 = sbr.rel (%p523) target = $region64
        $region63: #{tpu_custom_call.1} parent=55 // pred_region
          %s526 = sand.u32 %s37, 1
          %s527 = scalar_lea.sflag [#allocation6], %s526
          %s528 = sand.u32 %s73, 1
          %s529 = smul.addr %s528, 128
          %s530 = scalar_lea.vmem [#allocation5], %s529
          %s531 = smul.u32 16, %s37
          %s533 = ssub.s32 2048, 2048
          %534 = vsyncadd %s527, %s533
          %s535 = smul.addr %s531, 128
          %s536 = scalar_lea.hbm %s1, %s535
          %s537 = sshll.u32 %s530, 4
          %s538 = int_to_ptr.vmem [resolvable:$true] %s537
          %543 = dma.hbm_to_vmem [thread:$0]  %s536, 2048, %s538, %s527, 128, 128, 8
        $region64: #{tpu_custom_call.1} parent=55 // pred_fallthru
          _
        // Predicated region
        $region65: #{tpu_custom_call.1} parent=55 // pred_check
          %p544 = pneg %p109
        $region66: #{tpu_custom_call.1} parent=55 // pred_check_branch
          %546 = sbr.rel (%p544) target = $region68
        $region67: #{tpu_custom_call.1} parent=55 // pred_region
          %s547 = sand.u32 %s37, 1
          %s548 = scalar_lea.sflag [#allocation6], %s547
          %s549 = sand.u32 %s99, 1
          %s550 = smul.addr %s549, 128
          %s551 = scalar_lea.vmem [#allocation7], %s550
          %s552 = smul.u32 16, %s37
          %s554 = ssub.s32 2048, 2048
          %555 = vsyncadd %s548, %s554
          %s556 = smul.addr %s552, 128
          %s557 = scalar_lea.hbm %s2, %s556
          %s558 = sshll.u32 %s551, 4
          %s559 = int_to_ptr.vmem [resolvable:$true] %s558
          %564 = dma.hbm_to_vmem [thread:$0]  %s557, 2048, %s559, %s548, 128, 128, 8
        $region68: #{tpu_custom_call.1} parent=55 // pred_fallthru
          _
      $region56: #{tpu_custom_call.1} parent=5 // pred_fallthru
        _
      %p565 = scmp.le.s32.totalorder 1, %s37
      %p566 = scmp.lt.s32.totalorder %s37, 3
      %p567 = pnand %p565, %p566
      %p568 = pneg %p567
      // Predicated region
      $region69: #{tpu_custom_call.1} parent=5 // pred_check
        _
      $region70: #{tpu_custom_call.1} parent=5 // pred_check_branch
        %570 = sbr.rel (%p567) target = $region72
      $region71: #{tpu_custom_call.1} parent=5 // pred_region
        %s571 = ssub.s32 %s37, 1
        %s572 = sand.u32 %s50, 1
        %s573 = scalar_lea.sflag [#allocation3], %s572
        %s574 = sand.u32 %s50, 1
        %s575 = smul.addr %s574, 128
        %s576 = scalar_lea.vmem [#allocation2], %s575
        // Predicated region
        $region73: #{tpu_custom_call.1} parent=71 // pred_check
          %p577 = pneg %p63
        $region74: #{tpu_custom_call.1} parent=71 // pred_check_branch
          %579 = sbr.rel (%p577) target = $region76
        $region75: #{tpu_custom_call.1} parent=71 // pred_region
          %580 = dma.done %s573, 2048
        $region76: #{tpu_custom_call.1} parent=71 // pred_fallthru
          _
        %s581 = sand.u32 %s42, 1
        %s582 = scalar_lea.sflag [#allocation6], %s581
        %s583 = sand.u32 %s76, 1
        %s584 = smul.addr %s583, 128
        %s585 = scalar_lea.vmem [#allocation5], %s584
        // Predicated region
        $region77: #{tpu_custom_call.1} parent=71 // pred_check
          %p586 = pneg %p89
        $region78: #{tpu_custom_call.1} parent=71 // pred_check_branch
          %588 = sbr.rel (%p586) target = $region80
        $region79: #{tpu_custom_call.1} parent=71 // pred_region
          %589 = dma.done %s582, 2048
        $region80: #{tpu_custom_call.1} parent=71 // pred_fallthru
          _
        %s590 = sand.u32 %s42, 1
        %s591 = scalar_lea.sflag [#allocation6], %s590
        %s592 = sand.u32 %s102, 1
        %s593 = smul.addr %s592, 128
        %s594 = scalar_lea.vmem [#allocation7], %s593
        // Predicated region
        $region81: #{tpu_custom_call.1} parent=71 // pred_check
          %p595 = pneg %p115
        $region82: #{tpu_custom_call.1} parent=71 // pred_check_branch
          %597 = sbr.rel (%p595) target = $region84
        $region83: #{tpu_custom_call.1} parent=71 // pred_region
          %598 = dma.done %s591, 2048
        $region84: #{tpu_custom_call.1} parent=71 // pred_fallthru
          _
        // Predicated region
        $region85: #{tpu_custom_call.1} parent=71 // pred_check
          %p599 = pneg %p136
        $region86: #{tpu_custom_call.1} parent=71 // pred_check_branch
          %601 = sbr.rel (%p599) target = $region88
        $region87: #{tpu_custom_call.1} parent=71 // pred_region
          %602 = dma.done [#allocation9], 1024
        $region88: #{tpu_custom_call.1} parent=71 // pred_fallthru
          _
        // Predicated region
        $region89: #{tpu_custom_call.1} parent=71 // pred_check
          %p603 = pneg %p178
        $region90: #{tpu_custom_call.1} parent=71 // pred_check_branch
          %605 = sbr.rel (%p603) target = $region92
        $region91: #{tpu_custom_call.1} parent=71 // pred_region
          %606 = dma.done [#allocation9], 1024
        $region92: #{tpu_custom_call.1} parent=71 // pred_fallthru
          _
        // Predicated region
        $region93: #{tpu_custom_call.1} parent=71 // pred_check
          %p607 = pneg %p220
        $region94: #{tpu_custom_call.1} parent=71 // pred_check_branch
          %609 = sbr.rel (%p607) target = $region96
        $region95: #{tpu_custom_call.1} parent=71 // pred_region
          %610 = dma.done [#allocation12], 1024
        $region96: #{tpu_custom_call.1} parent=71 // pred_fallthru
          _
        // Predicated region
        $region97: #{tpu_custom_call.1} parent=71 // pred_check
          %p611 = pneg %p262
        $region98: #{tpu_custom_call.1} parent=71 // pred_check_branch
          %613 = sbr.rel (%p611) target = $region100
        $region99: #{tpu_custom_call.1} parent=71 // pred_region
          %614 = dma.done [#allocation12], 1024
        $region100: #{tpu_custom_call.1} parent=71 // pred_fallthru
          _
        // Predicated region
        $region101: #{tpu_custom_call.1} parent=71 // pred_check
          %p615 = pneg %p304
        $region102: #{tpu_custom_call.1} parent=71 // pred_check_branch
          %617 = sbr.rel (%p615) target = $region104
        $region103: #{tpu_custom_call.1} parent=71 // pred_region
          %618 = dma.done [#allocation15], 1024
        $region104: #{tpu_custom_call.1} parent=71 // pred_fallthru
          _
        %s619 = sand.u32 %s50, 1
        %s620 = scalar_lea.sflag [#allocation3], %s619
        %s621 = sand.u32 %s50, 1
        %s622 = smul.addr %s621, 128
        %s623 = scalar_lea.vmem [#allocation2], %s622
        %p624 = pneg %p63
        %p625 = pneg %p60
        %s626 = sand.u32 %s42, 1
        %s627 = scalar_lea.sflag [#allocation6], %s626
        %s628 = sand.u32 %s76, 1
        %s629 = smul.addr %s628, 128
        %s630 = scalar_lea.vmem [#allocation5], %s629
        %p631 = pneg %p89
        %p632 = pneg %p86
        %s633 = sand.u32 %s42, 1
        %s634 = scalar_lea.sflag [#allocation6], %s633
        %s635 = sand.u32 %s102, 1
        %s636 = smul.addr %s635, 128
        %s637 = scalar_lea.vmem [#allocation7], %s636
        %p638 = pneg %p115
        %p639 = pneg %p112
        %p640 = pneg %p136
        %p641 = pneg %p133
        %p642 = pneg %p157
        %p643 = pneg %p154
        %p644 = pneg %p178
        %p645 = pneg %p175
        %p646 = pneg %p199
        %p647 = pneg %p196
        %p648 = pneg %p220
        %p649 = pneg %p217
        %p650 = pneg %p241
        %p651 = pneg %p238
        %p652 = pneg %p262
        %p653 = pneg %p259
        %p654 = pneg %p283
        %p655 = pneg %p280
        %p656 = pneg %p304
        %p657 = pneg %p301
        %p658 = pneg %p325
        %p659 = pneg %p322
        %p660 = pneg %p351
        %p661 = pneg %p348
        %s662 = sand.u32 %s338, 1
        %s663 = scalar_lea.sflag [#allocation4], %s662
        %s664 = sand.u32 %s338, 1
        %s665 = smul.addr %s664, 128
        %s666 = scalar_lea.vmem [#allocation16], %s665
        %p667 = pneg %p377
        %p668 = pneg %p374
        %s669 = sand.u32 %s42, 1
        %s670 = scalar_lea.sflag [#allocation18], %s669
        %s671 = sand.u32 %s364, 1
        %s672 = smul.addr %s671, 128
        %s673 = scalar_lea.vmem [#allocation17], %s672
        %p674 = pneg %p403
        %p675 = pneg %p400
        %s676 = sand.u32 %s42, 1
        %s677 = scalar_lea.sflag [#allocation18], %s676
        %s678 = sand.u32 %s390, 1
        %s679 = smul.addr %s678, 128
        %s680 = scalar_lea.vmem [#allocation19], %s679
        %s681 = smul.u32 16, %s42
        %s682 = smul.u32 16, %s42
        %s683 = smul.u32 16, %s42
        %s684 = smul.u32 16, %s42
        %s685 = smul.u32 16, %s42
        %s686 = smul.u32 16, %s42
        %v688 = vld [vmem:[%s576] sm:$0xff]
        %v689 = vld [vmem:[%s576 + $0x8] sm:$0xff]
        %v690 = vld [vmem:[%s576 + $0x10] sm:$0xff]
        %v691 = vld [vmem:[%s576 + $0x18] sm:$0xff]
        %v692 = vld [vmem:[%s576 + $0x20] sm:$0xff]
        %v693 = vld [vmem:[%s576 + $0x28] sm:$0xff]
        %v694 = vld [vmem:[%s576 + $0x30] sm:$0xff]
        %v695 = vld [vmem:[%s576 + $0x38] sm:$0xff]
        %v696 = vld [vmem:[%s576 + $0x40] sm:$0xff]
        %v697 = vld [vmem:[%s576 + $0x48] sm:$0xff]
        %v698 = vld [vmem:[%s576 + $0x50] sm:$0xff]
        %v699 = vld [vmem:[%s576 + $0x58] sm:$0xff]
        %v700 = vld [vmem:[%s576 + $0x60] sm:$0xff]
        %v701 = vld [vmem:[%s576 + $0x68] sm:$0xff]
        %v702 = vld [vmem:[%s576 + $0x70] sm:$0xff]
        %v703 = vld [vmem:[%s576 + $0x78] sm:$0xff]
        %v704 = vld [vmem:[%s585] sm:$0xff]
        %v705 = vld [vmem:[%s585 + $0x8] sm:$0xff]
        %v706 = vld [vmem:[%s585 + $0x10] sm:$0xff]
        %v707 = vld [vmem:[%s585 + $0x18] sm:$0xff]
        %v708 = vld [vmem:[%s585 + $0x20] sm:$0xff]
        %v709 = vld [vmem:[%s585 + $0x28] sm:$0xff]
        %v710 = vld [vmem:[%s585 + $0x30] sm:$0xff]
        %v711 = vld [vmem:[%s585 + $0x38] sm:$0xff]
        %v712 = vld [vmem:[%s585 + $0x40] sm:$0xff]
        %v713 = vld [vmem:[%s585 + $0x48] sm:$0xff]
        %v714 = vld [vmem:[%s585 + $0x50] sm:$0xff]
        %v715 = vld [vmem:[%s585 + $0x58] sm:$0xff]
        %v716 = vld [vmem:[%s585 + $0x60] sm:$0xff]
        %v717 = vld [vmem:[%s585 + $0x68] sm:$0xff]
        %v718 = vld [vmem:[%s585 + $0x70] sm:$0xff]
        %v719 = vld [vmem:[%s585 + $0x78] sm:$0xff]
        %v720 = vmul.f32 %v688, %v704
        %v721 = vmul.f32 %v689, %v705
        %v722 = vmul.f32 %v690, %v706
        %v723 = vmul.f32 %v691, %v707
        %v724 = vmul.f32 %v692, %v708
        %v725 = vmul.f32 %v693, %v709
        %v726 = vmul.f32 %v694, %v710
        %v727 = vmul.f32 %v695, %v711
        %v728 = vmul.f32 %v696, %v712
        %v729 = vmul.f32 %v697, %v713
        %v730 = vmul.f32 %v698, %v714
        %v731 = vmul.f32 %v699, %v715
        %v732 = vmul.f32 %v700, %v716
        %v733 = vmul.f32 %v701, %v717
        %v734 = vmul.f32 %v702, %v718
        %v735 = vmul.f32 %v703, %v719
        %v736 = vpack.c.bf16 %v721, %v720
        %v737 = vpack.c.bf16 %v723, %v722
        %v738 = vpack.c.bf16 %v725, %v724
        %v739 = vpack.c.bf16 %v727, %v726
        %v740 = vpack.c.bf16 %v729, %v728
        %v741 = vpack.c.bf16 %v731, %v730
        %v742 = vpack.c.bf16 %v733, %v732
        %v743 = vpack.c.bf16 %v735, %v734
        %v744 = vld [vmem:[#allocation8] sm:$0xf]
        %v745 = vld [vmem:[#allocation8 + $0x4] sm:$0xf]
        %v746 = vld [vmem:[#allocation8 + $0x8] sm:$0xf]
        %v747 = vld [vmem:[#allocation8 + $0xc] sm:$0xf]
        %v748 = vld [vmem:[#allocation8 + $0x10] sm:$0xf]
        %v749 = vld [vmem:[#allocation8 + $0x14] sm:$0xf]
        %v750 = vld [vmem:[#allocation8 + $0x18] sm:$0xf]
        %v751 = vld [vmem:[#allocation8 + $0x1c] sm:$0xf]
        %v752 = vld [vmem:[#allocation8 + $0x20] sm:$0xf]
        %v753 = vld [vmem:[#allocation8 + $0x24] sm:$0xf]
        %v754 = vld [vmem:[#allocation8 + $0x28] sm:$0xf]
        %v755 = vld [vmem:[#allocation8 + $0x2c] sm:$0xf]
        %v756 = vld [vmem:[#allocation8 + $0x30] sm:$0xf]
        %v757 = vld [vmem:[#allocation8 + $0x34] sm:$0xf]
        %v758 = vld [vmem:[#allocation8 + $0x38] sm:$0xf]
        %v759 = vld [vmem:[#allocation8 + $0x3c] sm:$0xf]
        %v760 = vld [vmem:[%s4] sm:$0x1]
        %v762 = vlaneseq
        %v763 = vshrl.u32 %v762, 7
        %v764 = vsub.s32 0, %v763
        %v765 = vrot.slane %v760, %v764
        %v783 = vunpack.c.l.b16 %v744
        %v784 = vunpack.c.l.b16 %v745
        %v785 = vunpack.c.l.b16 %v746
        %v786 = vunpack.c.l.b16 %v747
        %v787 = vunpack.c.l.b16 %v748
        %v788 = vunpack.c.l.b16 %v749
        %v789 = vunpack.c.l.b16 %v750
        %v790 = vunpack.c.l.b16 %v751
        %v791 = vunpack.c.l.b16 %v752
        %v792 = vunpack.c.l.b16 %v753
        %v793 = vunpack.c.l.b16 %v754
        %v794 = vunpack.c.l.b16 %v755
        %v795 = vunpack.c.l.b16 %v756
        %v796 = vunpack.c.l.b16 %v757
        %v797 = vunpack.c.l.b16 %v758
        %v798 = vunpack.c.l.b16 %v759
        %v799 = vpack.c.b16 %v784, %v783
        %v800 = vpack.c.b16 %v786, %v785
        %v801 = vpack.c.b16 %v788, %v787
        %v802 = vpack.c.b16 %v790, %v789
        %v803 = vpack.c.b16 %v792, %v791
        %v804 = vpack.c.b16 %v794, %v793
        %v805 = vpack.c.b16 %v796, %v795
        %v806 = vpack.c.b16 %v798, %v797
        %815 = vmatprep.subr.bf16.mxu0 0
        %816 = vmatpush1.bf16.msra.mxu0 %v799
        %817 = vmatprep.subr.bf16.mxu0 0
        %818 = vmatpush1.bf16.msra.mxu0 %v800
        %819 = vmatprep.subr.bf16.mxu0 0
        %820 = vmatpush1.bf16.msra.mxu0 %v801
        %821 = vmatprep.subr.bf16.mxu0 0
        %822 = vmatpush1.bf16.msra.mxu0 %v802
        %823 = vmatprep.subr.bf16.mxu0 0
        %824 = vmatpush1.bf16.msra.mxu0 %v803
        %825 = vmatprep.subr.bf16.mxu0 0
        %826 = vmatpush1.bf16.msra.mxu0 %v804
        %827 = vmatprep.subr.bf16.mxu0 0
        %828 = vmatpush1.bf16.msra.mxu0 %v805
        %829 = vmatprep.subr.bf16.mxu0 0
        %830 = vmatpush1.bf16.msra.mxu0 %v806
        %831 = vmatprep.subr.bf16.mxu0 0
        %832 = vmatpush1.bf16.msra.mxu0 0
        %833 = vmatprep.subr.bf16.mxu0 0
        %834 = vmatpush1.bf16.msra.mxu0 0
        %835 = vmatprep.subr.bf16.mxu0 0
        %836 = vmatpush1.bf16.msra.mxu0 0
        %837 = vmatprep.subr.bf16.mxu0 0
        %838 = vmatpush1.bf16.msra.mxu0 0
        %839 = vmatprep.subr.bf16.mxu0 0
        %840 = vmatpush1.bf16.msra.mxu0 0
        %841 = vmatprep.subr.bf16.mxu0 0
        %842 = vmatpush1.bf16.msra.mxu0 0
        %843 = vmatprep.subr.bf16.mxu0 0
        %844 = vmatpush1.bf16.msra.mxu0 0
        %845 = vmatprep.subr.bf16.mxu0 0
        %846 = vmatpush1.bf16.msra.mxu0 0
        %847 = vmatprep.mubr.bf16.mxu0 0
        %848 = vmatmul.mubr.bf16.gmra.mrb[0].mxu0 %v736
        %v849 = vpop.f32.mrb[0].mxu0
        %v850 = vadd.f32 %v765, %v849
        %v851 = vpop.f32.mrb[0].mxu0
        %v852 = vpop.f32.mrb[0].mxu0
        %v853 = vadd.f32 %v765, %v852
        %v854 = vpop.f32.mrb[0].mxu0
        %855 = vmatprep.mubr.bf16.mxu0 0
        %856 = vmatmul.mubr.bf16.gmra.mrb[0].mxu0 %v737
        %v857 = vpop.f32.mrb[0].mxu0
        %v858 = vadd.f32 %v765, %v857
        %v859 = vpop.f32.mrb[0].mxu0
        %v860 = vpop.f32.mrb[0].mxu0
        %v861 = vadd.f32 %v765, %v860
        %v862 = vpop.f32.mrb[0].mxu0
        %863 = vmatprep.mubr.bf16.mxu0 0
        %864 = vmatmul.mubr.bf16.gmra.mrb[0].mxu0 %v738
        %v865 = vpop.f32.mrb[0].mxu0
        %v866 = vadd.f32 %v765, %v865
        %v867 = vpop.f32.mrb[0].mxu0
        %v868 = vpop.f32.mrb[0].mxu0
        %v869 = vadd.f32 %v765, %v868
        %v870 = vpop.f32.mrb[0].mxu0
        %871 = vmatprep.mubr.bf16.mxu0 0
        %872 = vmatmul.mubr.bf16.gmra.mrb[0].mxu0 %v739
        %v873 = vpop.f32.mrb[0].mxu0
        %v874 = vadd.f32 %v765, %v873
        %v875 = vpop.f32.mrb[0].mxu0
        %v876 = vpop.f32.mrb[0].mxu0
        %v877 = vadd.f32 %v765, %v876
        %v878 = vpop.f32.mrb[0].mxu0
        %879 = vmatprep.mubr.bf16.mxu0 0
        %880 = vmatmul.mubr.bf16.gmra.mrb[0].mxu0 %v740
        %v881 = vpop.f32.mrb[0].mxu0
        %v882 = vadd.f32 %v765, %v881
        %v883 = vpop.f32.mrb[0].mxu0
        %v884 = vpop.f32.mrb[0].mxu0
        %v885 = vadd.f32 %v765, %v884
        %v886 = vpop.f32.mrb[0].mxu0
        %887 = vmatprep.mubr.bf16.mxu0 0
        %888 = vmatmul.mubr.bf16.gmra.mrb[0].mxu0 %v741
        %v889 = vpop.f32.mrb[0].mxu0
        %v890 = vadd.f32 %v765, %v889
        %v891 = vpop.f32.mrb[0].mxu0
        %v892 = vpop.f32.mrb[0].mxu0
        %v893 = vadd.f32 %v765, %v892
        %v894 = vpop.f32.mrb[0].mxu0
        %895 = vmatprep.mubr.bf16.mxu0 0
        %896 = vmatmul.mubr.bf16.gmra.mrb[0].mxu0 %v742
        %v897 = vpop.f32.mrb[0].mxu0
        %v898 = vadd.f32 %v765, %v897
        %v899 = vpop.f32.mrb[0].mxu0
        %v900 = vpop.f32.mrb[0].mxu0
        %v901 = vadd.f32 %v765, %v900
        %v902 = vpop.f32.mrb[0].mxu0
        %903 = vmatprep.mubr.bf16.mxu0 0
        %904 = vmatmul.mubr.bf16.gmra.mrb[0].mxu0 %v743
        %v905 = vpop.f32.mrb[0].mxu0
        %v906 = vadd.f32 %v765, %v905
        %v907 = vpop.f32.mrb[0].mxu0
        %v908 = vpop.f32.mrb[0].mxu0
        %v909 = vadd.f32 %v765, %v908
        %v910 = vpop.f32.mrb[0].mxu0
        %911 = vdwg.mxu0
        %v912 = vmax.f32 %v850, 0.0
        %v913 = vmax.f32 %v853, 0.0
        %v914 = vmax.f32 %v858, 0.0
        %v915 = vmax.f32 %v861, 0.0
        %v916 = vmax.f32 %v866, 0.0
        %v917 = vmax.f32 %v869, 0.0
        %v918 = vmax.f32 %v874, 0.0
        %v919 = vmax.f32 %v877, 0.0
        %v920 = vmax.f32 %v882, 0.0
        %v921 = vmax.f32 %v885, 0.0
        %v922 = vmax.f32 %v890, 0.0
        %v923 = vmax.f32 %v893, 0.0
        %v924 = vmax.f32 %v898, 0.0
        %v925 = vmax.f32 %v901, 0.0
        %v926 = vmax.f32 %v906, 0.0
        %v927 = vmax.f32 %v909, 0.0
        %v928 = vpack.c.bf16 %v913, %v912
        %v929 = vpack.c.bf16 %v915, %v914
        %v930 = vpack.c.bf16 %v917, %v916
        %v931 = vpack.c.bf16 %v919, %v918
        %v932 = vpack.c.bf16 %v921, %v920
        %v933 = vpack.c.bf16 %v923, %v922
        %v934 = vpack.c.bf16 %v925, %v924
        %v935 = vpack.c.bf16 %v927, %v926
        %v936 = vld [vmem:[#allocation10] sm:$0xf]
        %v937 = vld [vmem:[#allocation10 + $0x4] sm:$0xf]
        %v938 = vld [vmem:[#allocation10 + $0x8] sm:$0xf]
        %v939 = vld [vmem:[#allocation10 + $0xc] sm:$0xf]
        %v940 = vld [vmem:[#allocation10 + $0x10] sm:$0xf]
        %v941 = vld [vmem:[#allocation10 + $0x14] sm:$0xf]
        %v942 = vld [vmem:[#allocation10 + $0x18] sm:$0xf]
        %v943 = vld [vmem:[#allocation10 + $0x1c] sm:$0xf]
        %v944 = vld [vmem:[#allocation10 + $0x20] sm:$0xf]
        %v945 = vld [vmem:[#allocation10 + $0x24] sm:$0xf]
        %v946 = vld [vmem:[#allocation10 + $0x28] sm:$0xf]
        %v947 = vld [vmem:[#allocation10 + $0x2c] sm:$0xf]
        %v948 = vld [vmem:[#allocation10 + $0x30] sm:$0xf]
        %v949 = vld [vmem:[#allocation10 + $0x34] sm:$0xf]
        %v950 = vld [vmem:[#allocation10 + $0x38] sm:$0xf]
        %v951 = vld [vmem:[#allocation10 + $0x3c] sm:$0xf]
        %v952 = vld [vmem:[%s6] sm:$0x1]
        %v954 = vlaneseq
        %v955 = vshrl.u32 %v954, 7
        %v956 = vsub.s32 0, %v955
        %v957 = vrot.slane %v952, %v956
        %v975 = vunpack.c.l.b16 %v936
        %v976 = vunpack.c.l.b16 %v937
        %v977 = vunpack.c.l.b16 %v938
        %v978 = vunpack.c.l.b16 %v939
        %v979 = vunpack.c.l.b16 %v940
        %v980 = vunpack.c.l.b16 %v941
        %v981 = vunpack.c.l.b16 %v942
        %v982 = vunpack.c.l.b16 %v943
        %v983 = vunpack.c.l.b16 %v944
        %v984 = vunpack.c.l.b16 %v945
        %v985 = vunpack.c.l.b16 %v946
        %v986 = vunpack.c.l.b16 %v947
        %v987 = vunpack.c.l.b16 %v948
        %v988 = vunpack.c.l.b16 %v949
        %v989 = vunpack.c.l.b16 %v950
        %v990 = vunpack.c.l.b16 %v951
        %v991 = vpack.c.b16 %v976, %v975
        %v992 = vpack.c.b16 %v978, %v977
        %v993 = vpack.c.b16 %v980, %v979
        %v994 = vpack.c.b16 %v982, %v981
        %v995 = vpack.c.b16 %v984, %v983
        %v996 = vpack.c.b16 %v986, %v985
        %v997 = vpack.c.b16 %v988, %v987
        %v998 = vpack.c.b16 %v990, %v989
        %1007 = vmatprep.subr.bf16.mxu0 0
        %1008 = vmatpush1.bf16.msra.mxu0 %v991
        %1009 = vmatprep.subr.bf16.mxu0 0
        %1010 = vmatpush1.bf16.msra.mxu0 %v992
        %1011 = vmatprep.subr.bf16.mxu0 0
        %1012 = vmatpush1.bf16.msra.mxu0 %v993
        %1013 = vmatprep.subr.bf16.mxu0 0
        %1014 = vmatpush1.bf16.msra.mxu0 %v994
        %1015 = vmatprep.subr.bf16.mxu0 0
        %1016 = vmatpush1.bf16.msra.mxu0 %v995
        %1017 = vmatprep.subr.bf16.mxu0 0
        %1018 = vmatpush1.bf16.msra.mxu0 %v996
        %1019 = vmatprep.subr.bf16.mxu0 0
        %1020 = vmatpush1.bf16.msra.mxu0 %v997
        %1021 = vmatprep.subr.bf16.mxu0 0
        %1022 = vmatpush1.bf16.msra.mxu0 %v998
        %1023 = vmatprep.subr.bf16.mxu0 0
        %1024 = vmatpush1.bf16.msra.mxu0 0
        %1025 = vmatprep.subr.bf16.mxu0 0
        %1026 = vmatpush1.bf16.msra.mxu0 0
        %1027 = vmatprep.subr.bf16.mxu0 0
        %1028 = vmatpush1.bf16.msra.mxu0 0
        %1029 = vmatprep.subr.bf16.mxu0 0
        %1030 = vmatpush1.bf16.msra.mxu0 0
        %1031 = vmatprep.subr.bf16.mxu0 0
        %1032 = vmatpush1.bf16.msra.mxu0 0
        %1033 = vmatprep.subr.bf16.mxu0 0
        %1034 = vmatpush1.bf16.msra.mxu0 0
        %1035 = vmatprep.subr.bf16.mxu0 0
        %1036 = vmatpush1.bf16.msra.mxu0 0
        %1037 = vmatprep.subr.bf16.mxu0 0
        %1038 = vmatpush1.bf16.msra.mxu0 0
        %1039 = vmatprep.mubr.bf16.mxu0 0
        %1040 = vmatmul.mubr.bf16.gmra.mrb[0].mxu0 %v928
        %v1041 = vpop.f32.mrb[0].mxu0
        %v1042 = vadd.f32 %v957, %v1041
        %v1043 = vpop.f32.mrb[0].mxu0
        %v1044 = vpop.f32.mrb[0].mxu0
        %v1045 = vadd.f32 %v957, %v1044
        %v1046 = vpop.f32.mrb[0].mxu0
        %1047 = vmatprep.mubr.bf16.mxu0 0
        %1048 = vmatmul.mubr.bf16.gmra.mrb[0].mxu0 %v929
        %v1049 = vpop.f32.mrb[0].mxu0
        %v1050 = vadd.f32 %v957, %v1049
        %v1051 = vpop.f32.mrb[0].mxu0
        %v1052 = vpop.f32.mrb[0].mxu0
        %v1053 = vadd.f32 %v957, %v1052
        %v1054 = vpop.f32.mrb[0].mxu0
        %1055 = vmatprep.mubr.bf16.mxu0 0
        %1056 = vmatmul.mubr.bf16.gmra.mrb[0].mxu0 %v930
        %v1057 = vpop.f32.mrb[0].mxu0
        %v1058 = vadd.f32 %v957, %v1057
        %v1059 = vpop.f32.mrb[0].mxu0
        %v1060 = vpop.f32.mrb[0].mxu0
        %v1061 = vadd.f32 %v957, %v1060
        %v1062 = vpop.f32.mrb[0].mxu0
        %1063 = vmatprep.mubr.bf16.mxu0 0
        %1064 = vmatmul.mubr.bf16.gmra.mrb[0].mxu0 %v931
        %v1065 = vpop.f32.mrb[0].mxu0
        %v1066 = vadd.f32 %v957, %v1065
        %v1067 = vpop.f32.mrb[0].mxu0
        %v1068 = vpop.f32.mrb[0].mxu0
        %v1069 = vadd.f32 %v957, %v1068
        %v1070 = vpop.f32.mrb[0].mxu0
        %1071 = vmatprep.mubr.bf16.mxu0 0
        %1072 = vmatmul.mubr.bf16.gmra.mrb[0].mxu0 %v932
        %v1073 = vpop.f32.mrb[0].mxu0
        %v1074 = vadd.f32 %v957, %v1073
        %v1075 = vpop.f32.mrb[0].mxu0
        %v1076 = vpop.f32.mrb[0].mxu0
        %v1077 = vadd.f32 %v957, %v1076
        %v1078 = vpop.f32.mrb[0].mxu0
        %1079 = vmatprep.mubr.bf16.mxu0 0
        %1080 = vmatmul.mubr.bf16.gmra.mrb[0].mxu0 %v933
        %v1081 = vpop.f32.mrb[0].mxu0
        %v1082 = vadd.f32 %v957, %v1081
        %v1083 = vpop.f32.mrb[0].mxu0
        %v1084 = vpop.f32.mrb[0].mxu0
        %v1085 = vadd.f32 %v957, %v1084
        %v1086 = vpop.f32.mrb[0].mxu0
        %1087 = vmatprep.mubr.bf16.mxu0 0
        %1088 = vmatmul.mubr.bf16.gmra.mrb[0].mxu0 %v934
        %v1089 = vpop.f32.mrb[0].mxu0
        %v1090 = vadd.f32 %v957, %v1089
        %v1091 = vpop.f32.mrb[0].mxu0
        %v1092 = vpop.f32.mrb[0].mxu0
        %v1093 = vadd.f32 %v957, %v1092
        %v1094 = vpop.f32.mrb[0].mxu0
        %1095 = vmatprep.mubr.bf16.mxu0 0
        %1096 = vmatmul.mubr.bf16.gmra.mrb[0].mxu0 %v935
        %v1097 = vpop.f32.mrb[0].mxu0
        %v1098 = vadd.f32 %v957, %v1097
        %v1099 = vpop.f32.mrb[0].mxu0
        %v1100 = vpop.f32.mrb[0].mxu0
        %v1101 = vadd.f32 %v957, %v1100
        %v1102 = vpop.f32.mrb[0].mxu0
        %1103 = vdwg.mxu0
        %v1104 = vld [vmem:[#allocation11] sm:$0xf]
        %v1105 = vld [vmem:[#allocation11 + $0x4] sm:$0xf]
        %v1106 = vld [vmem:[#allocation11 + $0x8] sm:$0xf]
        %v1107 = vld [vmem:[#allocation11 + $0xc] sm:$0xf]
        %v1108 = vld [vmem:[#allocation11 + $0x10] sm:$0xf]
        %v1109 = vld [vmem:[#allocation11 + $0x14] sm:$0xf]
        %v1110 = vld [vmem:[#allocation11 + $0x18] sm:$0xf]
        %v1111 = vld [vmem:[#allocation11 + $0x1c] sm:$0xf]
        %v1112 = vld [vmem:[#allocation11 + $0x20] sm:$0xf]
        %v1113 = vld [vmem:[#allocation11 + $0x24] sm:$0xf]
        %v1114 = vld [vmem:[#allocation11 + $0x28] sm:$0xf]
        %v1115 = vld [vmem:[#allocation11 + $0x2c] sm:$0xf]
        %v1116 = vld [vmem:[#allocation11 + $0x30] sm:$0xf]
        %v1117 = vld [vmem:[#allocation11 + $0x34] sm:$0xf]
        %v1118 = vld [vmem:[#allocation11 + $0x38] sm:$0xf]
        %v1119 = vld [vmem:[#allocation11 + $0x3c] sm:$0xf]
        %v1120 = vld [vmem:[%s8] sm:$0x1]
        %v1122 = vlaneseq
        %v1123 = vshrl.u32 %v1122, 7
        %v1124 = vsub.s32 0, %v1123
        %v1125 = vrot.slane %v1120, %v1124
        %v1143 = vunpack.c.l.b16 %v1104
        %v1144 = vunpack.c.l.b16 %v1105
        %v1145 = vunpack.c.l.b16 %v1106
        %v1146 = vunpack.c.l.b16 %v1107
        %v1147 = vunpack.c.l.b16 %v1108
        %v1148 = vunpack.c.l.b16 %v1109
        %v1149 = vunpack.c.l.b16 %v1110
        %v1150 = vunpack.c.l.b16 %v1111
        %v1151 = vunpack.c.l.b16 %v1112
        %v1152 = vunpack.c.l.b16 %v1113
        %v1153 = vunpack.c.l.b16 %v1114
        %v1154 = vunpack.c.l.b16 %v1115
        %v1155 = vunpack.c.l.b16 %v1116
        %v1156 = vunpack.c.l.b16 %v1117
        %v1157 = vunpack.c.l.b16 %v1118
        %v1158 = vunpack.c.l.b16 %v1119
        %v1159 = vpack.c.b16 %v1144, %v1143
        %v1160 = vpack.c.b16 %v1146, %v1145
        %v1161 = vpack.c.b16 %v1148, %v1147
        %v1162 = vpack.c.b16 %v1150, %v1149
        %v1163 = vpack.c.b16 %v1152, %v1151
        %v1164 = vpack.c.b16 %v1154, %v1153
        %v1165 = vpack.c.b16 %v1156, %v1155
        %v1166 = vpack.c.b16 %v1158, %v1157
        %1175 = vmatprep.subr.bf16.mxu0 0
        %1176 = vmatpush1.bf16.msra.mxu0 %v1159
        %1177 = vmatprep.subr.bf16.mxu0 0
        %1178 = vmatpush1.bf16.msra.mxu0 %v1160
        %1179 = vmatprep.subr.bf16.mxu0 0
        %1180 = vmatpush1.bf16.msra.mxu0 %v1161
        %1181 = vmatprep.subr.bf16.mxu0 0
        %1182 = vmatpush1.bf16.msra.mxu0 %v1162
        %1183 = vmatprep.subr.bf16.mxu0 0
        %1184 = vmatpush1.bf16.msra.mxu0 %v1163
        %1185 = vmatprep.subr.bf16.mxu0 0
        %1186 = vmatpush1.bf16.msra.mxu0 %v1164
        %1187 = vmatprep.subr.bf16.mxu0 0
        %1188 = vmatpush1.bf16.msra.mxu0 %v1165
        %1189 = vmatprep.subr.bf16.mxu0 0
        %1190 = vmatpush1.bf16.msra.mxu0 %v1166
        %1191 = vmatprep.subr.bf16.mxu0 0
        %1192 = vmatpush1.bf16.msra.mxu0 0
        %1193 = vmatprep.subr.bf16.mxu0 0
        %1194 = vmatpush1.bf16.msra.mxu0 0
        %1195 = vmatprep.subr.bf16.mxu0 0
        %1196 = vmatpush1.bf16.msra.mxu0 0
        %1197 = vmatprep.subr.bf16.mxu0 0
        %1198 = vmatpush1.bf16.msra.mxu0 0
        %1199 = vmatprep.subr.bf16.mxu0 0
        %1200 = vmatpush1.bf16.msra.mxu0 0
        %1201 = vmatprep.subr.bf16.mxu0 0
        %1202 = vmatpush1.bf16.msra.mxu0 0
        %1203 = vmatprep.subr.bf16.mxu0 0
        %1204 = vmatpush1.bf16.msra.mxu0 0
        %1205 = vmatprep.subr.bf16.mxu0 0
        %1206 = vmatpush1.bf16.msra.mxu0 0
        %1207 = vmatprep.mubr.bf16.mxu0 0
        %1208 = vmatmul.mubr.bf16.gmra.mrb[0].mxu0 %v928
        %v1209 = vpop.f32.mrb[0].mxu0
        %v1210 = vadd.f32 %v1125, %v1209
        %v1211 = vpop.f32.mrb[0].mxu0
        %v1212 = vpop.f32.mrb[0].mxu0
        %v1213 = vadd.f32 %v1125, %v1212
        %v1214 = vpop.f32.mrb[0].mxu0
        %1215 = vmatprep.mubr.bf16.mxu0 0
        %1216 = vmatmul.mubr.bf16.gmra.mrb[0].mxu0 %v929
        %v1217 = vpop.f32.mrb[0].mxu0
        %v1218 = vadd.f32 %v1125, %v1217
        %v1219 = vpop.f32.mrb[0].mxu0
        %v1220 = vpop.f32.mrb[0].mxu0
        %v1221 = vadd.f32 %v1125, %v1220
        %v1222 = vpop.f32.mrb[0].mxu0
        %1223 = vmatprep.mubr.bf16.mxu0 0
        %1224 = vmatmul.mubr.bf16.gmra.mrb[0].mxu0 %v930
        %v1225 = vpop.f32.mrb[0].mxu0
        %v1226 = vadd.f32 %v1125, %v1225
        %v1227 = vpop.f32.mrb[0].mxu0
        %v1228 = vpop.f32.mrb[0].mxu0
        %v1229 = vadd.f32 %v1125, %v1228
        %v1230 = vpop.f32.mrb[0].mxu0
        %1231 = vmatprep.mubr.bf16.mxu0 0
        %1232 = vmatmul.mubr.bf16.gmra.mrb[0].mxu0 %v931
        %v1233 = vpop.f32.mrb[0].mxu0
        %v1234 = vadd.f32 %v1125, %v1233
        %v1235 = vpop.f32.mrb[0].mxu0
        %v1236 = vpop.f32.mrb[0].mxu0
        %v1237 = vadd.f32 %v1125, %v1236
        %v1238 = vpop.f32.mrb[0].mxu0
        %1239 = vmatprep.mubr.bf16.mxu0 0
        %1240 = vmatmul.mubr.bf16.gmra.mrb[0].mxu0 %v932
        %v1241 = vpop.f32.mrb[0].mxu0
        %v1242 = vadd.f32 %v1125, %v1241
        %v1243 = vpop.f32.mrb[0].mxu0
        %v1244 = vpop.f32.mrb[0].mxu0
        %v1245 = vadd.f32 %v1125, %v1244
        %v1246 = vpop.f32.mrb[0].mxu0
        %1247 = vmatprep.mubr.bf16.mxu0 0
        %1248 = vmatmul.mubr.bf16.gmra.mrb[0].mxu0 %v933
        %v1249 = vpop.f32.mrb[0].mxu0
        %v1250 = vadd.f32 %v1125, %v1249
        %v1251 = vpop.f32.mrb[0].mxu0
        %v1252 = vpop.f32.mrb[0].mxu0
        %v1253 = vadd.f32 %v1125, %v1252
        %v1254 = vpop.f32.mrb[0].mxu0
        %1255 = vmatprep.mubr.bf16.mxu0 0
        %1256 = vmatmul.mubr.bf16.gmra.mrb[0].mxu0 %v934
        %v1257 = vpop.f32.mrb[0].mxu0
        %v1258 = vadd.f32 %v1125, %v1257
        %v1259 = vpop.f32.mrb[0].mxu0
        %v1260 = vpop.f32.mrb[0].mxu0
        %v1261 = vadd.f32 %v1125, %v1260
        %v1262 = vpop.f32.mrb[0].mxu0
        %1263 = vmatprep.mubr.bf16.mxu0 0
        %1264 = vmatmul.mubr.bf16.gmra.mrb[0].mxu0 %v935
        %v1265 = vpop.f32.mrb[0].mxu0
        %v1266 = vadd.f32 %v1125, %v1265
        %v1267 = vpop.f32.mrb[0].mxu0
        %v1268 = vpop.f32.mrb[0].mxu0
        %v1269 = vadd.f32 %v1125, %v1268
        %v1270 = vpop.f32.mrb[0].mxu0
        %1271 = vdwg.mxu0
        %v1272 = vld [vmem:[%s594] sm:$0xff]
        %v1273 = vld [vmem:[%s594 + $0x8] sm:$0xff]
        %v1274 = vld [vmem:[%s594 + $0x10] sm:$0xff]
        %v1275 = vld [vmem:[%s594 + $0x18] sm:$0xff]
        %v1276 = vld [vmem:[%s594 + $0x20] sm:$0xff]
        %v1277 = vld [vmem:[%s594 + $0x28] sm:$0xff]
        %v1278 = vld [vmem:[%s594 + $0x30] sm:$0xff]
        %v1279 = vld [vmem:[%s594 + $0x38] sm:$0xff]
        %v1280 = vld [vmem:[%s594 + $0x40] sm:$0xff]
        %v1281 = vld [vmem:[%s594 + $0x48] sm:$0xff]
        %v1282 = vld [vmem:[%s594 + $0x50] sm:$0xff]
        %v1283 = vld [vmem:[%s594 + $0x58] sm:$0xff]
        %v1284 = vld [vmem:[%s594 + $0x60] sm:$0xff]
        %v1285 = vld [vmem:[%s594 + $0x68] sm:$0xff]
        %v1286 = vld [vmem:[%s594 + $0x70] sm:$0xff]
        %v1287 = vld [vmem:[%s594 + $0x78] sm:$0xff]
        %v1288 = vmul.f32 %v1210, 0.5
        %v1289 = vmul.f32 %v1213, 0.5
        %v1290 = vmul.f32 %v1218, 0.5
        %v1291 = vmul.f32 %v1221, 0.5
        %v1292 = vmul.f32 %v1226, 0.5
        %v1293 = vmul.f32 %v1229, 0.5
        %v1294 = vmul.f32 %v1234, 0.5
        %v1295 = vmul.f32 %v1237, 0.5
        %v1296 = vmul.f32 %v1242, 0.5
        %v1297 = vmul.f32 %v1245, 0.5
        %v1298 = vmul.f32 %v1250, 0.5
        %v1299 = vmul.f32 %v1253, 0.5
        %v1300 = vmul.f32 %v1258, 0.5
        %v1301 = vmul.f32 %v1261, 0.5
        %v1302 = vmul.f32 %v1266, 0.5
        %v1303 = vmul.f32 %v1269, 0.5
        %v1304 = vmul.f32 %v1288, 1.442695
        %v1305 = vpow.pop %v1304
        %v1306 = vmul.f32 %v1289, 1.442695
        %v1307 = vpow.pop %v1306
        %v1308 = vmul.f32 %v1290, 1.442695
        %v1309 = vpow.pop %v1308
        %v1310 = vmul.f32 %v1291, 1.442695
        %v1311 = vpow.pop %v1310
        %v1312 = vmul.f32 %v1292, 1.442695
        %v1313 = vpow.pop %v1312
        %v1314 = vmul.f32 %v1293, 1.442695
        %v1315 = vpow.pop %v1314
        %v1316 = vmul.f32 %v1294, 1.442695
        %v1317 = vpow.pop %v1316
        %v1318 = vmul.f32 %v1295, 1.442695
        %v1319 = vpow.pop %v1318
        %v1320 = vmul.f32 %v1296, 1.442695
        %v1321 = vpow.pop %v1320
        %v1322 = vmul.f32 %v1297, 1.442695
        %v1323 = vpow.pop %v1322
        %v1324 = vmul.f32 %v1298, 1.442695
        %v1325 = vpow.pop %v1324
        %v1326 = vmul.f32 %v1299, 1.442695
        %v1327 = vpow.pop %v1326
        %v1328 = vmul.f32 %v1300, 1.442695
        %v1329 = vpow.pop %v1328
        %v1330 = vmul.f32 %v1301, 1.442695
        %v1331 = vpow.pop %v1330
        %v1332 = vmul.f32 %v1302, 1.442695
        %v1333 = vpow.pop %v1332
        %v1334 = vmul.f32 %v1303, 1.442695
        %v1335 = vpow.pop %v1334
        %v1336 = vmul.f32 %v1272, %v1305
        %v1337 = vmul.f32 %v1273, %v1307
        %v1338 = vmul.f32 %v1274, %v1309
        %v1339 = vmul.f32 %v1275, %v1311
        %v1340 = vmul.f32 %v1276, %v1313
        %v1341 = vmul.f32 %v1277, %v1315
        %v1342 = vmul.f32 %v1278, %v1317
        %v1343 = vmul.f32 %v1279, %v1319
        %v1344 = vmul.f32 %v1280, %v1321
        %v1345 = vmul.f32 %v1281, %v1323
        %v1346 = vmul.f32 %v1282, %v1325
        %v1347 = vmul.f32 %v1283, %v1327
        %v1348 = vmul.f32 %v1284, %v1329
        %v1349 = vmul.f32 %v1285, %v1331
        %v1350 = vmul.f32 %v1286, %v1333
        %v1351 = vmul.f32 %v1287, %v1335
        %v1352 = vadd.f32 %v1042, %v1336
        %v1353 = vadd.f32 %v1045, %v1337
        %v1354 = vadd.f32 %v1050, %v1338
        %v1355 = vadd.f32 %v1053, %v1339
        %v1356 = vadd.f32 %v1058, %v1340
        %v1357 = vadd.f32 %v1061, %v1341
        %v1358 = vadd.f32 %v1066, %v1342
        %v1359 = vadd.f32 %v1069, %v1343
        %v1360 = vadd.f32 %v1074, %v1344
        %v1361 = vadd.f32 %v1077, %v1345
        %v1362 = vadd.f32 %v1082, %v1346
        %v1363 = vadd.f32 %v1085, %v1347
        %v1364 = vadd.f32 %v1090, %v1348
        %v1365 = vadd.f32 %v1093, %v1349
        %v1366 = vadd.f32 %v1098, %v1350
        %v1367 = vadd.f32 %v1101, %v1351
        %v1368 = vpack.c.bf16 %v1353, %v1352
        %v1369 = vpack.c.bf16 %v1355, %v1354
        %v1370 = vpack.c.bf16 %v1357, %v1356
        %v1371 = vpack.c.bf16 %v1359, %v1358
        %v1372 = vpack.c.bf16 %v1361, %v1360
        %v1373 = vpack.c.bf16 %v1363, %v1362
        %v1374 = vpack.c.bf16 %v1365, %v1364
        %v1375 = vpack.c.bf16 %v1367, %v1366
        %v1376 = vld [vmem:[#allocation13] sm:$0xf]
        %v1377 = vld [vmem:[#allocation13 + $0x4] sm:$0xf]
        %v1378 = vld [vmem:[#allocation13 + $0x8] sm:$0xf]
        %v1379 = vld [vmem:[#allocation13 + $0xc] sm:$0xf]
        %v1380 = vld [vmem:[#allocation13 + $0x10] sm:$0xf]
        %v1381 = vld [vmem:[#allocation13 + $0x14] sm:$0xf]
        %v1382 = vld [vmem:[#allocation13 + $0x18] sm:$0xf]
        %v1383 = vld [vmem:[#allocation13 + $0x1c] sm:$0xf]
        %v1384 = vld [vmem:[#allocation13 + $0x20] sm:$0xf]
        %v1385 = vld [vmem:[#allocation13 + $0x24] sm:$0xf]
        %v1386 = vld [vmem:[#allocation13 + $0x28] sm:$0xf]
        %v1387 = vld [vmem:[#allocation13 + $0x2c] sm:$0xf]
        %v1388 = vld [vmem:[#allocation13 + $0x30] sm:$0xf]
        %v1389 = vld [vmem:[#allocation13 + $0x34] sm:$0xf]
        %v1390 = vld [vmem:[#allocation13 + $0x38] sm:$0xf]
        %v1391 = vld [vmem:[#allocation13 + $0x3c] sm:$0xf]
        %v1392 = vld [vmem:[%s10] sm:$0x1]
        %v1394 = vlaneseq
        %v1395 = vshrl.u32 %v1394, 7
        %v1396 = vsub.s32 0, %v1395
        %v1397 = vrot.slane %v1392, %v1396
        %v1415 = vunpack.c.l.b16 %v1376
        %v1416 = vunpack.c.l.b16 %v1377
        %v1417 = vunpack.c.l.b16 %v1378
        %v1418 = vunpack.c.l.b16 %v1379
        %v1419 = vunpack.c.l.b16 %v1380
        %v1420 = vunpack.c.l.b16 %v1381
        %v1421 = vunpack.c.l.b16 %v1382
        %v1422 = vunpack.c.l.b16 %v1383
        %v1423 = vunpack.c.l.b16 %v1384
        %v1424 = vunpack.c.l.b16 %v1385
        %v1425 = vunpack.c.l.b16 %v1386
        %v1426 = vunpack.c.l.b16 %v1387
        %v1427 = vunpack.c.l.b16 %v1388
        %v1428 = vunpack.c.l.b16 %v1389
        %v1429 = vunpack.c.l.b16 %v1390
        %v1430 = vunpack.c.l.b16 %v1391
        %v1431 = vpack.c.b16 %v1416, %v1415
        %v1432 = vpack.c.b16 %v1418, %v1417
        %v1433 = vpack.c.b16 %v1420, %v1419
        %v1434 = vpack.c.b16 %v1422, %v1421
        %v1435 = vpack.c.b16 %v1424, %v1423
        %v1436 = vpack.c.b16 %v1426, %v1425
        %v1437 = vpack.c.b16 %v1428, %v1427
        %v1438 = vpack.c.b16 %v1430, %v1429
        %1447 = vmatprep.subr.bf16.mxu0 0
        %1448 = vmatpush1.bf16.msra.mxu0 %v1431
        %1449 = vmatprep.subr.bf16.mxu0 0
        %1450 = vmatpush1.bf16.msra.mxu0 %v1432
        %1451 = vmatprep.subr.bf16.mxu0 0
        %1452 = vmatpush1.bf16.msra.mxu0 %v1433
        %1453 = vmatprep.subr.bf16.mxu0 0
        %1454 = vmatpush1.bf16.msra.mxu0 %v1434
        %1455 = vmatprep.subr.bf16.mxu0 0
        %1456 = vmatpush1.bf16.msra.mxu0 %v1435
        %1457 = vmatprep.subr.bf16.mxu0 0
        %1458 = vmatpush1.bf16.msra.mxu0 %v1436
        %1459 = vmatprep.subr.bf16.mxu0 0
        %1460 = vmatpush1.bf16.msra.mxu0 %v1437
        %1461 = vmatprep.subr.bf16.mxu0 0
        %1462 = vmatpush1.bf16.msra.mxu0 %v1438
        %1463 = vmatprep.subr.bf16.mxu0 0
        %1464 = vmatpush1.bf16.msra.mxu0 0
        %1465 = vmatprep.subr.bf16.mxu0 0
        %1466 = vmatpush1.bf16.msra.mxu0 0
        %1467 = vmatprep.subr.bf16.mxu0 0
        %1468 = vmatpush1.bf16.msra.mxu0 0
        %1469 = vmatprep.subr.bf16.mxu0 0
        %1470 = vmatpush1.bf16.msra.mxu0 0
        %1471 = vmatprep.subr.bf16.mxu0 0
        %1472 = vmatpush1.bf16.msra.mxu0 0
        %1473 = vmatprep.subr.bf16.mxu0 0
        %1474 = vmatpush1.bf16.msra.mxu0 0
        %1475 = vmatprep.subr.bf16.mxu0 0
        %1476 = vmatpush1.bf16.msra.mxu0 0
        %1477 = vmatprep.subr.bf16.mxu0 0
        %1478 = vmatpush1.bf16.msra.mxu0 0
        %1479 = vmatprep.mubr.bf16.mxu0 0
        %1480 = vmatmul.mubr.bf16.gmra.mrb[0].mxu0 %v1368
        %v1481 = vpop.f32.mrb[0].mxu0
        %v1482 = vadd.f32 %v1397, %v1481
        %v1483 = vpop.f32.mrb[0].mxu0
        %v1484 = vpop.f32.mrb[0].mxu0
        %v1485 = vadd.f32 %v1397, %v1484
        %v1486 = vpop.f32.mrb[0].mxu0
        %1487 = vmatprep.mubr.bf16.mxu0 0
        %1488 = vmatmul.mubr.bf16.gmra.mrb[0].mxu0 %v1369
        %v1489 = vpop.f32.mrb[0].mxu0
        %v1490 = vadd.f32 %v1397, %v1489
        %v1491 = vpop.f32.mrb[0].mxu0
        %v1492 = vpop.f32.mrb[0].mxu0
        %v1493 = vadd.f32 %v1397, %v1492
        %v1494 = vpop.f32.mrb[0].mxu0
        %1495 = vmatprep.mubr.bf16.mxu0 0
        %1496 = vmatmul.mubr.bf16.gmra.mrb[0].mxu0 %v1370
        %v1497 = vpop.f32.mrb[0].mxu0
        %v1498 = vadd.f32 %v1397, %v1497
        %v1499 = vpop.f32.mrb[0].mxu0
        %v1500 = vpop.f32.mrb[0].mxu0
        %v1501 = vadd.f32 %v1397, %v1500
        %v1502 = vpop.f32.mrb[0].mxu0
        %1503 = vmatprep.mubr.bf16.mxu0 0
        %1504 = vmatmul.mubr.bf16.gmra.mrb[0].mxu0 %v1371
        %v1505 = vpop.f32.mrb[0].mxu0
        %v1506 = vadd.f32 %v1397, %v1505
        %v1507 = vpop.f32.mrb[0].mxu0
        %v1508 = vpop.f32.mrb[0].mxu0
        %v1509 = vadd.f32 %v1397, %v1508
        %v1510 = vpop.f32.mrb[0].mxu0
        %1511 = vmatprep.mubr.bf16.mxu0 0
        %1512 = vmatmul.mubr.bf16.gmra.mrb[0].mxu0 %v1372
        %v1513 = vpop.f32.mrb[0].mxu0
        %v1514 = vadd.f32 %v1397, %v1513
        %v1515 = vpop.f32.mrb[0].mxu0
        %v1516 = vpop.f32.mrb[0].mxu0
        %v1517 = vadd.f32 %v1397, %v1516
        %v1518 = vpop.f32.mrb[0].mxu0
        %1519 = vmatprep.mubr.bf16.mxu0 0
        %1520 = vmatmul.mubr.bf16.gmra.mrb[0].mxu0 %v1373
        %v1521 = vpop.f32.mrb[0].mxu0
        %v1522 = vadd.f32 %v1397, %v1521
        %v1523 = vpop.f32.mrb[0].mxu0
        %v1524 = vpop.f32.mrb[0].mxu0
        %v1525 = vadd.f32 %v1397, %v1524
        %v1526 = vpop.f32.mrb[0].mxu0
        %1527 = vmatprep.mubr.bf16.mxu0 0
        %1528 = vmatmul.mubr.bf16.gmra.mrb[0].mxu0 %v1374
        %v1529 = vpop.f32.mrb[0].mxu0
        %v1530 = vadd.f32 %v1397, %v1529
        %v1531 = vpop.f32.mrb[0].mxu0
        %v1532 = vpop.f32.mrb[0].mxu0
        %v1533 = vadd.f32 %v1397, %v1532
        %v1534 = vpop.f32.mrb[0].mxu0
        %1535 = vmatprep.mubr.bf16.mxu0 0
        %1536 = vmatmul.mubr.bf16.gmra.mrb[0].mxu0 %v1375
        %v1537 = vpop.f32.mrb[0].mxu0
        %v1538 = vadd.f32 %v1397, %v1537
        %v1539 = vpop.f32.mrb[0].mxu0
        %v1540 = vpop.f32.mrb[0].mxu0
        %v1541 = vadd.f32 %v1397, %v1540
        %v1542 = vpop.f32.mrb[0].mxu0
        %1543 = vdwg.mxu0
        %v1544 = vmax.f32 %v1482, 0.0
        %v1545 = vmax.f32 %v1485, 0.0
        %v1546 = vmax.f32 %v1490, 0.0
        %v1547 = vmax.f32 %v1493, 0.0
        %v1548 = vmax.f32 %v1498, 0.0
        %v1549 = vmax.f32 %v1501, 0.0
        %v1550 = vmax.f32 %v1506, 0.0
        %v1551 = vmax.f32 %v1509, 0.0
        %v1552 = vmax.f32 %v1514, 0.0
        %v1553 = vmax.f32 %v1517, 0.0
        %v1554 = vmax.f32 %v1522, 0.0
        %v1555 = vmax.f32 %v1525, 0.0
        %v1556 = vmax.f32 %v1530, 0.0
        %v1557 = vmax.f32 %v1533, 0.0
        %v1558 = vmax.f32 %v1538, 0.0
        %v1559 = vmax.f32 %v1541, 0.0
        %v1560 = vpack.c.bf16 %v1545, %v1544
        %v1561 = vpack.c.bf16 %v1547, %v1546
        %v1562 = vpack.c.bf16 %v1549, %v1548
        %v1563 = vpack.c.bf16 %v1551, %v1550
        %v1564 = vpack.c.bf16 %v1553, %v1552
        %v1565 = vpack.c.bf16 %v1555, %v1554
        %v1566 = vpack.c.bf16 %v1557, %v1556
        %v1567 = vpack.c.bf16 %v1559, %v1558
        %v1568 = vld [vmem:[#allocation14] sm:$0xf]
        %v1569 = vld [vmem:[#allocation14 + $0x4] sm:$0xf]
        %v1570 = vld [vmem:[#allocation14 + $0x8] sm:$0xf]
        %v1571 = vld [vmem:[#allocation14 + $0xc] sm:$0xf]
        %v1572 = vld [vmem:[#allocation14 + $0x10] sm:$0xf]
        %v1573 = vld [vmem:[#allocation14 + $0x14] sm:$0xf]
        %v1574 = vld [vmem:[#allocation14 + $0x18] sm:$0xf]
        %v1575 = vld [vmem:[#allocation14 + $0x1c] sm:$0xf]
        %v1576 = vld [vmem:[#allocation14 + $0x20] sm:$0xf]
        %v1577 = vld [vmem:[#allocation14 + $0x24] sm:$0xf]
        %v1578 = vld [vmem:[#allocation14 + $0x28] sm:$0xf]
        %v1579 = vld [vmem:[#allocation14 + $0x2c] sm:$0xf]
        %v1580 = vld [vmem:[#allocation14 + $0x30] sm:$0xf]
        %v1581 = vld [vmem:[#allocation14 + $0x34] sm:$0xf]
        %v1582 = vld [vmem:[#allocation14 + $0x38] sm:$0xf]
        %v1583 = vld [vmem:[#allocation14 + $0x3c] sm:$0xf]
        %v1584 = vld [vmem:[%s12] sm:$0x1]
        %v1586 = vlaneseq
        %v1587 = vshrl.u32 %v1586, 7
        %v1588 = vsub.s32 0, %v1587
        %v1589 = vrot.slane %v1584, %v1588
        %v1607 = vunpack.c.l.b16 %v1568
        %v1608 = vunpack.c.l.b16 %v1569
        %v1609 = vunpack.c.l.b16 %v1570
        %v1610 = vunpack.c.l.b16 %v1571
        %v1611 = vunpack.c.l.b16 %v1572
        %v1612 = vunpack.c.l.b16 %v1573
        %v1613 = vunpack.c.l.b16 %v1574
        %v1614 = vunpack.c.l.b16 %v1575
        %v1615 = vunpack.c.l.b16 %v1576
        %v1616 = vunpack.c.l.b16 %v1577
        %v1617 = vunpack.c.l.b16 %v1578
        %v1618 = vunpack.c.l.b16 %v1579
        %v1619 = vunpack.c.l.b16 %v1580
        %v1620 = vunpack.c.l.b16 %v1581
        %v1621 = vunpack.c.l.b16 %v1582
        %v1622 = vunpack.c.l.b16 %v1583
        %v1623 = vpack.c.b16 %v1608, %v1607
        %v1624 = vpack.c.b16 %v1610, %v1609
        %v1625 = vpack.c.b16 %v1612, %v1611
        %v1626 = vpack.c.b16 %v1614, %v1613
        %v1627 = vpack.c.b16 %v1616, %v1615
        %v1628 = vpack.c.b16 %v1618, %v1617
        %v1629 = vpack.c.b16 %v1620, %v1619
        %v1630 = vpack.c.b16 %v1622, %v1621
        %1639 = vmatprep.subr.bf16.mxu0 0
        %1640 = vmatpush1.bf16.msra.mxu0 %v1623
        %1641 = vmatprep.subr.bf16.mxu0 0
        %1642 = vmatpush1.bf16.msra.mxu0 %v1624
        %1643 = vmatprep.subr.bf16.mxu0 0
        %1644 = vmatpush1.bf16.msra.mxu0 %v1625
        %1645 = vmatprep.subr.bf16.mxu0 0
        %1646 = vmatpush1.bf16.msra.mxu0 %v1626
        %1647 = vmatprep.subr.bf16.mxu0 0
        %1648 = vmatpush1.bf16.msra.mxu0 %v1627
        %1649 = vmatprep.subr.bf16.mxu0 0
        %1650 = vmatpush1.bf16.msra.mxu0 %v1628
        %1651 = vmatprep.subr.bf16.mxu0 0
        %1652 = vmatpush1.bf16.msra.mxu0 %v1629
        %1653 = vmatprep.subr.bf16.mxu0 0
        %1654 = vmatpush1.bf16.msra.mxu0 %v1630
        %1655 = vmatprep.subr.bf16.mxu0 0
        %1656 = vmatpush1.bf16.msra.mxu0 0
        %1657 = vmatprep.subr.bf16.mxu0 0
        %1658 = vmatpush1.bf16.msra.mxu0 0
        %1659 = vmatprep.subr.bf16.mxu0 0
        %1660 = vmatpush1.bf16.msra.mxu0 0
        %1661 = vmatprep.subr.bf16.mxu0 0
        %1662 = vmatpush1.bf16.msra.mxu0 0
        %1663 = vmatprep.subr.bf16.mxu0 0
        %1664 = vmatpush1.bf16.msra.mxu0 0
        %1665 = vmatprep.subr.bf16.mxu0 0
        %1666 = vmatpush1.bf16.msra.mxu0 0
        %1667 = vmatprep.subr.bf16.mxu0 0
        %1668 = vmatpush1.bf16.msra.mxu0 0
        %1669 = vmatprep.subr.bf16.mxu0 0
        %1670 = vmatpush1.bf16.msra.mxu0 0
        %1671 = vmatprep.mubr.bf16.mxu0 0
        %1672 = vmatmul.mubr.bf16.gmra.mrb[0].mxu0 %v1560
        %v1673 = vpop.f32.mrb[0].mxu0
        %v1674 = vadd.f32 %v1589, %v1673
        %v1675 = vpop.f32.mrb[0].mxu0
        %v1676 = vpop.f32.mrb[0].mxu0
        %v1677 = vadd.f32 %v1589, %v1676
        %v1678 = vpop.f32.mrb[0].mxu0
        %1679 = vmatprep.mubr.bf16.mxu0 0
        %1680 = vmatmul.mubr.bf16.gmra.mrb[0].mxu0 %v1561
        %v1681 = vpop.f32.mrb[0].mxu0
        %v1682 = vadd.f32 %v1589, %v1681
        %v1683 = vpop.f32.mrb[0].mxu0
        %v1684 = vpop.f32.mrb[0].mxu0
        %v1685 = vadd.f32 %v1589, %v1684
        %v1686 = vpop.f32.mrb[0].mxu0
        %1687 = vmatprep.mubr.bf16.mxu0 0
        %1688 = vmatmul.mubr.bf16.gmra.mrb[0].mxu0 %v1562
        %v1689 = vpop.f32.mrb[0].mxu0
        %v1690 = vadd.f32 %v1589, %v1689
        %v1691 = vpop.f32.mrb[0].mxu0
        %v1692 = vpop.f32.mrb[0].mxu0
        %v1693 = vadd.f32 %v1589, %v1692
        %v1694 = vpop.f32.mrb[0].mxu0
        %1695 = vmatprep.mubr.bf16.mxu0 0
        %1696 = vmatmul.mubr.bf16.gmra.mrb[0].mxu0 %v1563
        %v1697 = vpop.f32.mrb[0].mxu0
        %v1698 = vadd.f32 %v1589, %v1697
        %v1699 = vpop.f32.mrb[0].mxu0
        %v1700 = vpop.f32.mrb[0].mxu0
        %v1701 = vadd.f32 %v1589, %v1700
        %v1702 = vpop.f32.mrb[0].mxu0
        %1703 = vmatprep.mubr.bf16.mxu0 0
        %1704 = vmatmul.mubr.bf16.gmra.mrb[0].mxu0 %v1564
        %v1705 = vpop.f32.mrb[0].mxu0
        %v1706 = vadd.f32 %v1589, %v1705
        %v1707 = vpop.f32.mrb[0].mxu0
        %v1708 = vpop.f32.mrb[0].mxu0
        %v1709 = vadd.f32 %v1589, %v1708
        %v1710 = vpop.f32.mrb[0].mxu0
        %1711 = vmatprep.mubr.bf16.mxu0 0
        %1712 = vmatmul.mubr.bf16.gmra.mrb[0].mxu0 %v1565
        %v1713 = vpop.f32.mrb[0].mxu0
        %v1714 = vadd.f32 %v1589, %v1713
        %v1715 = vpop.f32.mrb[0].mxu0
        %v1716 = vpop.f32.mrb[0].mxu0
        %v1717 = vadd.f32 %v1589, %v1716
        %v1718 = vpop.f32.mrb[0].mxu0
        %1719 = vmatprep.mubr.bf16.mxu0 0
        %1720 = vmatmul.mubr.bf16.gmra.mrb[0].mxu0 %v1566
        %v1721 = vpop.f32.mrb[0].mxu0
        %v1722 = vadd.f32 %v1589, %v1721
        %v1723 = vpop.f32.mrb[0].mxu0
        %v1724 = vpop.f32.mrb[0].mxu0
        %v1725 = vadd.f32 %v1589, %v1724
        %v1726 = vpop.f32.mrb[0].mxu0
        %1727 = vmatprep.mubr.bf16.mxu0 0
        %1728 = vmatmul.mubr.bf16.gmra.mrb[0].mxu0 %v1567
        %v1729 = vpop.f32.mrb[0].mxu0
        %v1730 = vadd.f32 %v1589, %v1729
        %v1731 = vpop.f32.mrb[0].mxu0
        %v1732 = vpop.f32.mrb[0].mxu0
        %v1733 = vadd.f32 %v1589, %v1732
        %v1734 = vpop.f32.mrb[0].mxu0
        %1735 = vdwg.mxu0
        %v1736 = vmax.f32 %v1674, 0.0
        %v1737 = vmax.f32 %v1677, 0.0
        %v1738 = vmax.f32 %v1682, 0.0
        %v1739 = vmax.f32 %v1685, 0.0
        %v1740 = vmax.f32 %v1690, 0.0
        %v1741 = vmax.f32 %v1693, 0.0
        %v1742 = vmax.f32 %v1698, 0.0
        %v1743 = vmax.f32 %v1701, 0.0
        %v1744 = vmax.f32 %v1706, 0.0
        %v1745 = vmax.f32 %v1709, 0.0
        %v1746 = vmax.f32 %v1714, 0.0
        %v1747 = vmax.f32 %v1717, 0.0
        %v1748 = vmax.f32 %v1722, 0.0
        %v1749 = vmax.f32 %v1725, 0.0
        %v1750 = vmax.f32 %v1730, 0.0
        %v1751 = vmax.f32 %v1733, 0.0
        %1752 = vst [vmem:[%s666] sm:$0xff] %v1736
        %1753 = vst [vmem:[%s666 + $0x8] sm:$0xff] %v1737
        %1754 = vst [vmem:[%s666 + $0x10] sm:$0xff] %v1738
        %1755 = vst [vmem:[%s666 + $0x18] sm:$0xff] %v1739
        %1756 = vst [vmem:[%s666 + $0x20] sm:$0xff] %v1740
        %1757 = vst [vmem:[%s666 + $0x28] sm:$0xff] %v1741
        %1758 = vst [vmem:[%s666 + $0x30] sm:$0xff] %v1742
        %1759 = vst [vmem:[%s666 + $0x38] sm:$0xff] %v1743
        %1760 = vst [vmem:[%s666 + $0x40] sm:$0xff] %v1744
        %1761 = vst [vmem:[%s666 + $0x48] sm:$0xff] %v1745
        %1762 = vst [vmem:[%s666 + $0x50] sm:$0xff] %v1746
        %1763 = vst [vmem:[%s666 + $0x58] sm:$0xff] %v1747
        %1764 = vst [vmem:[%s666 + $0x60] sm:$0xff] %v1748
        %1765 = vst [vmem:[%s666 + $0x68] sm:$0xff] %v1749
        %1766 = vst [vmem:[%s666 + $0x70] sm:$0xff] %v1750
        %1767 = vst [vmem:[%s666 + $0x78] sm:$0xff] %v1751
        %1768 = vst [vmem:[%s673] sm:$0xff] %v1042
        %1769 = vst [vmem:[%s673 + $0x8] sm:$0xff] %v1045
        %1770 = vst [vmem:[%s673 + $0x10] sm:$0xff] %v1050
        %1771 = vst [vmem:[%s673 + $0x18] sm:$0xff] %v1053
        %1772 = vst [vmem:[%s673 + $0x20] sm:$0xff] %v1058
        %1773 = vst [vmem:[%s673 + $0x28] sm:$0xff] %v1061
        %1774 = vst [vmem:[%s673 + $0x30] sm:$0xff] %v1066
        %1775 = vst [vmem:[%s673 + $0x38] sm:$0xff] %v1069
        %1776 = vst [vmem:[%s673 + $0x40] sm:$0xff] %v1074
        %1777 = vst [vmem:[%s673 + $0x48] sm:$0xff] %v1077
        %1778 = vst [vmem:[%s673 + $0x50] sm:$0xff] %v1082
        %1779 = vst [vmem:[%s673 + $0x58] sm:$0xff] %v1085
        %1780 = vst [vmem:[%s673 + $0x60] sm:$0xff] %v1090
        %1781 = vst [vmem:[%s673 + $0x68] sm:$0xff] %v1093
        %1782 = vst [vmem:[%s673 + $0x70] sm:$0xff] %v1098
        %1783 = vst [vmem:[%s673 + $0x78] sm:$0xff] %v1101
        %1784 = vst [vmem:[%s680] sm:$0xff] %v1210
        %1785 = vst [vmem:[%s680 + $0x8] sm:$0xff] %v1213
        %1786 = vst [vmem:[%s680 + $0x10] sm:$0xff] %v1218
        %1787 = vst [vmem:[%s680 + $0x18] sm:$0xff] %v1221
        %1788 = vst [vmem:[%s680 + $0x20] sm:$0xff] %v1226
        %1789 = vst [vmem:[%s680 + $0x28] sm:$0xff] %v1229
        %1790 = vst [vmem:[%s680 + $0x30] sm:$0xff] %v1234
        %1791 = vst [vmem:[%s680 + $0x38] sm:$0xff] %v1237
        %1792 = vst [vmem:[%s680 + $0x40] sm:$0xff] %v1242
        %1793 = vst [vmem:[%s680 + $0x48] sm:$0xff] %v1245
        %1794 = vst [vmem:[%s680 + $0x50] sm:$0xff] %v1250
        %1795 = vst [vmem:[%s680 + $0x58] sm:$0xff] %v1253
        %1796 = vst [vmem:[%s680 + $0x60] sm:$0xff] %v1258
        %1797 = vst [vmem:[%s680 + $0x68] sm:$0xff] %v1261
        %1798 = vst [vmem:[%s680 + $0x70] sm:$0xff] %v1266
        %1799 = vst [vmem:[%s680 + $0x78] sm:$0xff] %v1269
        %s1800 = sand.u32 %s338, 1
        %s1801 = scalar_lea.sflag [#allocation4], %s1800
        %s1802 = sand.u32 %s338, 1
        %s1803 = smul.addr %s1802, 128
        %s1804 = scalar_lea.vmem [#allocation16], %s1803
        %s1805 = sand.u32 %s42, 1
        %s1806 = scalar_lea.sflag [#allocation18], %s1805
        %s1807 = sand.u32 %s364, 1
        %s1808 = smul.addr %s1807, 128
        %s1809 = scalar_lea.vmem [#allocation17], %s1808
        %s1810 = sand.u32 %s42, 1
        %s1811 = scalar_lea.sflag [#allocation18], %s1810
        %s1812 = sand.u32 %s390, 1
        %s1813 = smul.addr %s1812, 128
        %s1814 = scalar_lea.vmem [#allocation19], %s1813
        // Predicated region
        $region105: #{tpu_custom_call.1} parent=71 // pred_check
          %p1815 = pneg %p348
        $region106: #{tpu_custom_call.1} parent=71 // pred_check_branch
          %1817 = sbr.rel (%p1815) target = $region108
        $region107: #{tpu_custom_call.1} parent=71 // pred_region
          %s1818 = smul.u32 16, %s42
          %s1820 = ssub.s32 2048, 2048
          %1821 = vsyncadd %s1801, %s1820
          %s1822 = smul.addr %s1818, 128
          %s1823 = scalar_lea.hbm %s13, %s1822
          %s1824 = sshll.u32 %s1804, 4
          %s1825 = int_to_ptr.vmem [resolvable:$true] %s1824
          %1830 = dma.vmem_to_hbm [thread:$0]  %s1825, 2048, %s1823, %s1801, 128, 128, 8
        $region108: #{tpu_custom_call.1} parent=71 // pred_fallthru
          _
        // Predicated region
        $region109: #{tpu_custom_call.1} parent=71 // pred_check
          %p1831 = pneg %p374
        $region110: #{tpu_custom_call.1} parent=71 // pred_check_branch
          %1833 = sbr.rel (%p1831) target = $region112
        $region111: #{tpu_custom_call.1} parent=71 // pred_region
          %s1834 = smul.u32 16, %s42
          %s1836 = ssub.s32 2048, 2048
          %1837 = vsyncadd %s1806, %s1836
          %s1838 = smul.addr %s1834, 128
          %s1839 = scalar_lea.hbm %s14, %s1838
          %s1840 = sshll.u32 %s1809, 4
          %s1841 = int_to_ptr.vmem [resolvable:$true] %s1840
          %1846 = dma.vmem_to_hbm [thread:$0]  %s1841, 2048, %s1839, %s1806, 128, 128, 8
        $region112: #{tpu_custom_call.1} parent=71 // pred_fallthru
          _
        // Predicated region
        $region113: #{tpu_custom_call.1} parent=71 // pred_check
          %p1847 = pneg %p400
        $region114: #{tpu_custom_call.1} parent=71 // pred_check_branch
          %1849 = sbr.rel (%p1847) target = $region116
        $region115: #{tpu_custom_call.1} parent=71 // pred_region
          %s1850 = smul.u32 16, %s42
          %s1852 = ssub.s32 2048, 2048
          %1853 = vsyncadd %s1811, %s1852
          %s1854 = smul.addr %s1850, 128
          %s1855 = scalar_lea.hbm %s15, %s1854
          %s1856 = sshll.u32 %s1814, 4
          %s1857 = int_to_ptr.vmem [resolvable:$true] %s1856
          %1862 = dma.vmem_to_hbm [thread:$0]  %s1857, 2048, %s1855, %s1811, 128, 128, 8
        $region116: #{tpu_custom_call.1} parent=71 // pred_fallthru
          _
      $region72: #{tpu_custom_call.1} parent=5 // pred_fallthru
        _
      %p1863 = scmp.le.s32.totalorder 2, %s37
      // Predicated region
      $region117: #{tpu_custom_call.1} parent=5 // pred_check
        %p1864 = pneg %p1863
      $region118: #{tpu_custom_call.1} parent=5 // pred_check_branch
        %1866 = sbr.rel (%p1864) target = $region120
      $region119: #{tpu_custom_call.1} parent=5 // pred_region
        %s1867 = ssub.s32 %s37, 2
        // Predicated region
        $region121: #{tpu_custom_call.1} parent=119 // pred_check
          %p1868 = pneg %p354
        $region122: #{tpu_custom_call.1} parent=119 // pred_check_branch
          %1870 = sbr.rel (%p1868) target = $region124
        $region123: #{tpu_custom_call.1} parent=119 // pred_region
          %s1871 = sand.u32 %s339, 1
          %s1872 = scalar_lea.sflag [#allocation4], %s1871
          %s1873 = sand.u32 %s339, 1
          %s1874 = smul.addr %s1873, 128
          %s1875 = scalar_lea.vmem [#allocation16], %s1874
          %1876 = dma.done %s1872, 2048
        $region124: #{tpu_custom_call.1} parent=119 // pred_fallthru
          _
        // Predicated region
        $region125: #{tpu_custom_call.1} parent=119 // pred_check
          %p1877 = pneg %p380
        $region126: #{tpu_custom_call.1} parent=119 // pred_check_branch
          %1879 = sbr.rel (%p1877) target = $region128
        $region127: #{tpu_custom_call.1} parent=119 // pred_region
          %s1880 = sand.u32 %s43, 1
          %s1881 = scalar_lea.sflag [#allocation18], %s1880
          %s1882 = sand.u32 %s365, 1
          %s1883 = smul.addr %s1882, 128
          %s1884 = scalar_lea.vmem [#allocation17], %s1883
          %1885 = dma.done %s1881, 2048
        $region128: #{tpu_custom_call.1} parent=119 // pred_fallthru
          _
        // Predicated region
        $region129: #{tpu_custom_call.1} parent=119 // pred_check
          %p1886 = pneg %p406
        $region130: #{tpu_custom_call.1} parent=119 // pred_check_branch
          %1888 = sbr.rel (%p1886) target = $region132
        $region131: #{tpu_custom_call.1} parent=119 // pred_region
          %s1889 = sand.u32 %s43, 1
          %s1890 = scalar_lea.sflag [#allocation18], %s1889
          %s1891 = sand.u32 %s391, 1
          %s1892 = smul.addr %s1891, 128
          %s1893 = scalar_lea.vmem [#allocation19], %s1892
          %1894 = dma.done %s1890, 2048
        $region132: #{tpu_custom_call.1} parent=119 // pred_fallthru
          _
      $region120: #{tpu_custom_call.1} parent=5 // pred_fallthru
        _
    $region6: #{tpu_custom_call.1} parent=1 // loop_footer
      %s41 = sadd.s32 1, %s37
    $region7: #{tpu_custom_call.1} parent=1 // loop_footer_branch
      %36 = sbr.rel target = $region3
    $region8: #{tpu_custom_call.1} parent=1 // loop_exit
      _
    %1895 = vsyncpa [#allocation3], 1
    %s1896 = scalar_lea.sflag [#allocation3], 1
    %1897 = vsyncpa %s1896, 1
    %1898 = vsyncpa [#allocation6], 1
    %s1899 = scalar_lea.sflag [#allocation6], 1
    %1900 = vsyncpa %s1899, 1
    %1901 = vsyncpa [#allocation9], 1
    %1902 = vsyncpa [#allocation12], 1
    %1903 = vsyncpa [#allocation15], 1
    %1904 = vsyncpa [#allocation4], 1
    %s1905 = scalar_lea.sflag [#allocation4], 1
    %1906 = vsyncpa %s1905, 1
    %1907 = vsyncpa [#allocation18], 1
    %s1908 = scalar_lea.sflag [#allocation18], 1
    %1909 = vsyncpa %s1908, 1

</llo_original>
